<compile_context>
chip_gen: v6e
topology: v6e:2x2x1
jax: 0.10.0
libtpu: 0.0.40
codegen_flags: <defaults>
</compile_context>

<pallas_src>
import jax
import jax.numpy as jnp
import numpy as np
from jax.experimental import pallas as pl
from jax.experimental.pallas import tpu as pltpu

N_NODES = 32            # nodes per graph (small synthetic Cora-like graphs)
F_IN = 1433             # GraphConv in_feats (fixed by the module)
F_IN_PAD = 1536         # K padded to 12x128 for aligned, unmasked loads
F_HID = 16              # GraphConv(1433 -> 16)
F_OUT = 7               # GraphConv(16 -> 7)
F_OUT_PAD = 128         # lane-dense output width; sliced back to 7 in wrapper

N_GRAPHS = 8            # batch of independent graphs sharing the weights
GRAPHS_PER_BLOCK = 4    # graphs packed per grid step
TILE_M = GRAPHS_PER_BLOCK * N_NODES   # 128 node rows per grid step


def gcn_kernel(a_ref, x_ref, w1_ref, w2p_ref, bias_ref, out_ref):
    """One grid step = GRAPHS_PER_BLOCK graphs (TILE_M node rows).

    a_ref   : (TILE_M, TILE_M)      bf16  block-diagonal D^{-1/2} A D^{-1/2}
    x_ref   : (TILE_M, F_IN_PAD)    bf16  stacked node features (K zero-padded)
    w1_ref  : (F_IN_PAD, F_HID)     bf16  W1, MXU-native (K, N) layout
    w2p_ref : (F_HID, F_OUT_PAD)    bf16  W2 zero-padded to 128 lanes
    bias_ref: (2, F_OUT_PAD)        f32   row0 = b1 (padded), row1 = b2 (padded)
    out_ref : (TILE_M, F_OUT_PAD)   bf16
    """
    bias = bias_ref[...]
    b1 = bias[0:1, :F_HID]                                   # (1, F_HID)
    b2 = bias[1:2, :]                                        # (1, F_OUT_PAD)

    a = a_ref[...]                                           # (TILE_M, TILE_M) bf16

    # Layer 1: feature transform (dominant matmul, K = 1536) then aggregation.
    xw = jnp.dot(x_ref[...], w1_ref[...],
                 preferred_element_type=jnp.float32)         # (TILE_M, F_HID)
    h = jnp.dot(a, xw.astype(jnp.bfloat16),
                preferred_element_type=jnp.float32) + b1     # (TILE_M, F_HID)
    h = jnp.maximum(h, 0.0)                                  # ReLU

    # Layer 2, reassociated: aggregate first (narrow N=16), then project.
    ah = jnp.dot(a, h.astype(jnp.bfloat16),
                 preferred_element_type=jnp.float32)         # (TILE_M, F_HID)
    out = jnp.dot(ah.astype(jnp.bfloat16), w2p_ref[...],
                  preferred_element_type=jnp.float32) + b2   # (TILE_M, F_OUT_PAD)
    out_ref[...] = out.astype(jnp.bfloat16)


def gcn_forward(a_norm, x, w1, b1, w2, b2):
    """a_norm: (B,N,N) f32 normalized adjacencies; x: (B,N,F_IN) f32.
    w1: (F_IN,F_HID), b1: (F_HID,), w2: (F_HID,F_OUT), b2: (F_OUT,).
    Returns (B, N, F_OUT) f32 predictions."""
    b_graphs, n, _ = a_norm.shape
    assert n == N_NODES and b_graphs % GRAPHS_PER_BLOCK == 0
    num_blocks = b_graphs // GRAPHS_PER_BLOCK
    total_m = b_graphs * n

    # bf16 on all MXU-feeding paths; K zero-padded to 1536 (pads contribute 0).
    x2 = jnp.pad(x.reshape(total_m, F_IN).astype(jnp.float32),
                 ((0, 0), (0, F_IN_PAD - F_IN))).astype(jnp.bfloat16)
    w1p = jnp.pad(jnp.asarray(w1, jnp.float32),
                  ((0, F_IN_PAD - F_IN), (0, 0))).astype(jnp.bfloat16)

    # W2 zero-padded to a 128-lane output block; biases packed into one array.
    w2p = jnp.zeros((F_HID, F_OUT_PAD), jnp.float32).at[:, :F_OUT].set(w2)
    w2p = w2p.astype(jnp.bfloat16)
    bias = jnp.zeros((2, F_OUT_PAD), jnp.float32)
    bias = bias.at[0, :F_HID].set(b1)
    bias = bias.at[1, :F_OUT].set(b2)

    # Per grid block: block-diagonal stack of GRAPHS_PER_BLOCK normalized
    # adjacencies so aggregation is one dense (TILE_M,TILE_M) matmul (bf16).
    a4 = a_norm.reshape(num_blocks, GRAPHS_PER_BLOCK, n, n).astype(jnp.float32)
    eye = jnp.eye(GRAPHS_PER_BLOCK, dtype=jnp.float32)
    a_bd = jnp.einsum('bgij,gh->bgihj', a4, eye).reshape(
        num_blocks * TILE_M, TILE_M).astype(jnp.bfloat16)

    out = pl.pallas_call(
        gcn_kernel,
        out_shape=jax.ShapeDtypeStruct((total_m, F_OUT_PAD), jnp.bfloat16),
        grid=(num_blocks,),
        in_specs=[
            pl.BlockSpec((TILE_M, TILE_M), lambda g: (g, 0)),      # A block-diag
            pl.BlockSpec((TILE_M, F_IN_PAD), lambda g: (g, 0)),    # X tile
            pl.BlockSpec((F_IN_PAD, F_HID), lambda g: (0, 0)),     # W1 (resident)
            pl.BlockSpec((F_HID, F_OUT_PAD), lambda g: (0, 0)),    # W2 padded
            pl.BlockSpec((2, F_OUT_PAD), lambda g: (0, 0)),        # biases packed
        ],
        out_specs=pl.BlockSpec((TILE_M, F_OUT_PAD), lambda g: (g, 0)),
        compiler_params=pltpu.CompilerParams(
            dimension_semantics=("parallel",)),
    )(a_bd, x2, w1p, w2p, bias)

    return out[:, :F_OUT].astype(jnp.float32).reshape(b_graphs, n, F_OUT)


def build_inputs():
    key = jax.random.PRNGKey(0)
    k_adj, k_x, k_w1, k_b1, k_w2, k_b2 = jax.random.split(key, 6)

    # Batch of random symmetric adjacencies with self-loops (degree >= 1).
    logits = jax.random.uniform(k_adj, (N_GRAPHS, N_NODES, N_NODES))
    adj = (logits + jnp.swapaxes(logits, 1, 2) > 1.4).astype(jnp.float32)
    adj = jnp.maximum(adj, jnp.eye(N_NODES, dtype=jnp.float32)[None])

    # DGL norm='both': D^{-1/2} A D^{-1/2}  (graph-structure glue, not kernel)
    deg = jnp.sum(adj, axis=-1)
    dis = 1.0 / jnp.sqrt(deg)
    a_norm = adj * dis[:, :, None] * dis[:, None, :]

    x = jax.random.normal(k_x, (N_GRAPHS, N_NODES, F_IN), dtype=jnp.float32)

    def glorot(k, fan_in, fan_out):
        lim = jnp.sqrt(6.0 / (fan_in + fan_out))
        return jax.random.uniform(k, (fan_in, fan_out), jnp.float32, -lim, lim)

    w1 = glorot(k_w1, F_IN, F_HID)
    b1 = 0.1 * jax.random.normal(k_b1, (F_HID,), jnp.float32)
    w2 = glorot(k_w2, F_IN=None, fan_out=None) if False else glorot(k_w2, F_HID, F_OUT)
    b2 = 0.1 * jax.random.normal(k_b2, (F_OUT,), jnp.float32)
    return a_norm, x, w1, b1, w2, b2


def reference_forward(a_norm, x, w1, b1, w2, b2):
    """Pure float32 numpy reference (no bf16 rounding)."""
    a = np.asarray(a_norm, np.float32)
    xn = np.asarray(x, np.float32)
    w1n = np.asarray(w1, np.float32)
    w2n = np.asarray(w2, np.float32)
    b1n = np.asarray(b1, np.float32)
    b2n = np.asarray(b2, np.float32)
    outs = []
    for g in range(a.shape[0]):
        h = a[g] @ (xn[g] @ w1n) + b1n
        h = np.maximum(h, 0.0)
        outs.append(a[g] @ (h @ w2n) + b2n)
    return np.stack(outs)


if __name__ == "__main__":
    a_norm, x, w1, b1, w2, b2 = build_inputs()

    out = jax.block_until_ready(gcn_forward(a_norm, x, w1, b1, w2, b2))
    assert out.shape == (N_GRAPHS, N_NODES, F_OUT), out.shape

    ref = reference_forward(a_norm, x, w1, b1, w2, b2)
    # bf16 operands on every MXU path + bf16 output store, f32 accumulation;
    # validated against a pure-f32 reference per the review's guidance.
    np.testing.assert_allclose(np.asarray(out), ref, rtol=5e-2, atol=5e-2)

    print("KERNEL_OK")
</pallas_src>

<mosaic_0001>
module attributes {stable_mosaic.version = 11 : i64} {
  func.func @gcn_kernel(%arg0: i32, %arg1: memref<128x128xbf16, #tpu.memory_space<vmem>>, %arg2: memref<128x1536xbf16, #tpu.memory_space<vmem>>, %arg3: memref<1536x16xbf16, #tpu.memory_space<vmem>>, %arg4: memref<16x128xbf16, #tpu.memory_space<vmem>>, %arg5: memref<2x128xf32, #tpu.memory_space<vmem>>, %arg6: memref<128x128xbf16, #tpu.memory_space<vmem>>) attributes {dimension_semantics = [#tpu.dimension_semantics<parallel>], iteration_bounds = array<i64: 2>, scalar_prefetch = 0 : i64, scratch_operands = 0 : i64, tpu.core_type = #tpu.core_type<tc>, window_params = [{transform_indices = @transform_0, window_bounds = array<i64: 128, 128>}, {transform_indices = @transform_1, window_bounds = array<i64: 128, 1536>}, {pipeline_mode = #tpu.pipeline_mode<synchronous>, transform_indices = @transform_2, window_bounds = array<i64: 1536, 16>}, {pipeline_mode = #tpu.pipeline_mode<synchronous>, transform_indices = @transform_3, window_bounds = array<i64: 16, 128>}, {pipeline_mode = #tpu.pipeline_mode<synchronous>, transform_indices = @transform_4, window_bounds = array<i64: 2, 128>}, {transform_indices = @transform_5, window_bounds = array<i64: 128, 128>}]} {
    %c0 = arith.constant 0 : index
    %c0_0 = arith.constant 0 : index
    %0 = vector.load %arg5[%c0, %c0_0] : memref<2x128xf32, #tpu.memory_space<vmem>>, vector<2x128xf32>
    %1 = vector.extract_strided_slice %0 {offsets = [0, 0], sizes = [1, 16], strides = [1, 1]} : vector<2x128xf32> to vector<1x16xf32>
    %2 = vector.extract_strided_slice %0 {offsets = [1, 0], sizes = [1, 128], strides = [1, 1]} : vector<2x128xf32> to vector<1x128xf32>
    %c0_1 = arith.constant 0 : index
    %c0_2 = arith.constant 0 : index
    %3 = vector.load %arg1[%c0_1, %c0_2] : memref<128x128xbf16, #tpu.memory_space<vmem>>, vector<128x128xbf16>
    %c0_3 = arith.constant 0 : index
    %c0_4 = arith.constant 0 : index
    %4 = vector.load %arg2[%c0_3, %c0_4] : memref<128x1536xbf16, #tpu.memory_space<vmem>>, vector<128x1536xbf16>
    %c0_5 = arith.constant 0 : index
    %c0_6 = arith.constant 0 : index
    %5 = vector.load %arg3[%c0_5, %c0_6] : memref<1536x16xbf16, #tpu.memory_space<vmem>>, vector<1536x16xbf16>
    %cst = arith.constant dense<0.000000e+00> : vector<128x16xf32>
    %6 = tpu.matmul %4, %5, %cst {dimension_numbers = #tpu.dot_dimension_numbers<[1], [0], [0], [1], [0, 0, 1, 1], [], []>} : vector<128x1536xbf16>, vector<1536x16xbf16>, vector<128x16xf32> -> vector<128x16xf32>
    %7 = arith.truncf %6 : vector<128x16xf32> to vector<128x16xbf16>
    %cst_7 = arith.constant dense<0.000000e+00> : vector<128x16xf32>
    %8 = tpu.matmul %3, %7, %cst_7 {dimension_numbers = #tpu.dot_dimension_numbers<[1], [0], [0], [1], [0, 0, 1, 1], [], []>} : vector<128x128xbf16>, vector<128x16xbf16>, vector<128x16xf32> -> vector<128x16xf32>
    %9 = vector.broadcast %1 : vector<1x16xf32> to vector<128x16xf32>
    %10 = arith.addf %8, %9 : vector<128x16xf32>
    %cst_8 = arith.constant 0.000000e+00 : f32
    %11 = vector.broadcast %cst_8 : f32 to vector<128x16xf32>
    %12 = arith.maximumf %10, %11 : vector<128x16xf32>
    %13 = arith.truncf %12 : vector<128x16xf32> to vector<128x16xbf16>
    %cst_9 = arith.constant dense<0.000000e+00> : vector<128x16xf32>
    %14 = tpu.matmul %3, %13, %cst_9 {dimension_numbers = #tpu.dot_dimension_numbers<[1], [0], [0], [1], [0, 0, 1, 1], [], []>} : vector<128x128xbf16>, vector<128x16xbf16>, vector<128x16xf32> -> vector<128x16xf32>
    %15 = arith.truncf %14 : vector<128x16xf32> to vector<128x16xbf16>
    %c0_10 = arith.constant 0 : index
    %c0_11 = arith.constant 0 : index
    %16 = vector.load %arg4[%c0_10, %c0_11] : memref<16x128xbf16, #tpu.memory_space<vmem>>, vector<16x128xbf16>
    %cst_12 = arith.constant dense<0.000000e+00> : vector<128x128xf32>
    %17 = tpu.matmul %15, %16, %cst_12 {dimension_numbers = #tpu.dot_dimension_numbers<[1], [0], [0], [1], [0, 0, 1, 1], [], []>} : vector<128x16xbf16>, vector<16x128xbf16>, vector<128x128xf32> -> vector<128x128xf32>
    %18 = vector.broadcast %2 : vector<1x128xf32> to vector<128x128xf32>
    %19 = arith.addf %17, %18 : vector<128x128xf32>
    %20 = arith.truncf %19 : vector<128x128xf32> to vector<128x128xbf16>
    %c0_13 = arith.constant 0 : index
    %c0_14 = arith.constant 0 : index
    %21 = vector.load %arg6[%c0_13, %c0_14] : memref<128x128xbf16, #tpu.memory_space<vmem>>, vector<128x128xbf16>
    tpu.vector_store %arg6[%c0_13, %c0_14], %20 {strides = array<i32>} : memref<128x128xbf16, #tpu.memory_space<vmem>>, vector<128x128xbf16>,
    return
  }
  func.func @transform_0(%arg0: i32) -> (i32, i32) {
    %c0_i32 = arith.constant 0 : i32
    %c0_i32_0 = arith.constant 0 : i32
    return %arg0, %c0_i32 : i32, i32
  }
  func.func @transform_1(%arg0: i32) -> (i32, i32) {
    %c0_i32 = arith.constant 0 : i32
    %c0_i32_0 = arith.constant 0 : i32
    return %arg0, %c0_i32 : i32, i32
  }
  func.func @transform_2(%arg0: i32) -> (i32, i32) {
    %c0_i32 = arith.constant 0 : i32
    %c0_i32_0 = arith.constant 0 : i32
    %c0_i32_1 = arith.constant 0 : i32
    return %c0_i32, %c0_i32_0 : i32, i32
  }
  func.func @transform_3(%arg0: i32) -> (i32, i32) {
    %c0_i32 = arith.constant 0 : i32
    %c0_i32_0 = arith.constant 0 : i32
    %c0_i32_1 = arith.constant 0 : i32
    return %c0_i32, %c0_i32_0 : i32, i32
  }
  func.func @transform_4(%arg0: i32) -> (i32, i32) {
    %c0_i32 = arith.constant 0 : i32
    %c0_i32_0 = arith.constant 0 : i32
    %c0_i32_1 = arith.constant 0 : i32
    return %c0_i32, %c0_i32_0 : i32, i32
  }
  func.func @transform_5(%arg0: i32) -> (i32, i32) {
    %c0_i32 = arith.constant 0 : i32
    %c0_i32_0 = arith.constant 0 : i32
    return %arg0, %c0_i32 : i32, i32
  }
}

</mosaic_0001>

<llo_original>
// kernel: tpu_custom_call.1
$region0: #{tpu_custom_call.1}
  #allocation0 [shape = 'u32[]', space=smem, size = 0x4, offset = 0x4, fixed_abs, tag = 'smem constant byte address 0x4 - core index']
  #allocation1 [shape = 'u32[144,128]{1,0:T(1,128)}', space=vmem, size = 0x12000, scoped, tag = 'internal scratch']
  %s0 = inlined_call_operand.vmem [shape: bf16[256,128], index: 0, kind: input, shape index: {}]
  %s1 = inlined_call_operand.hbm [shape: bf16[256,1536], index: 1, kind: input, shape index: {}]
  %s2 = inlined_call_operand.vmem [shape: bf16[1536,16], index: 2, kind: input, shape index: {}]
  %s3 = inlined_call_operand.vmem [shape: bf16[16,128], index: 3, kind: input, shape index: {}]
  %s4 = inlined_call_operand.vmem [shape: f32[2,128], index: 4, kind: input, shape index: {}]
  %s5 = inlined_call_operand.hbm [shape: bf16[256,128], index: 5, kind: output, shape index: {}]
  %s6 = sld [smem:[#allocation0]]
  $region57: #{tpu_custom_call.1} parent=0
    _
  %s8 = ssub.s32 1, %s6
  %s9 = scalar_select 0, %s8, %s6
  $region1: #{tpu_custom_call.1} parent=0
    #allocation2 [shape = 'u8[786432]{0}', space=vmem, size = 0xc0000, scoped, tag = 'input window, operand 1']
    #allocation3 [shape = 's32[2]{0}', space=sflag, size = 0x8, scoped, tag = 'scoped memory for tpu_custom_call.1']
    #allocation4 [shape = 's32[2]{0}', space=sflag, size = 0x8, scoped, tag = 'scoped memory for tpu_custom_call.1']
    #allocation5 [shape = 'u8[65536]{0}', space=vmem, size = 0x10000, scoped, tag = 'output window, operand 0']
    %10 = vsyncpa [#allocation3], 0
    %s11 = scalar_lea.sflag [#allocation3], 1
    %12 = vsyncpa %s11, 0
    %13 = vsyncpa [#allocation4], 0
    %s14 = scalar_lea.sflag [#allocation4], 1
    %15 = vsyncpa %s14, 0
    loop: start=0, step=1, limit=4
    $region2: #{tpu_custom_call.1} parent=1 // loop_pre_header
      _
    $region3: #{tpu_custom_call.1} parent=1 // loop_header
      %s17 = sphi 0, %s21
      %p18 = scmp.ge.s32.totalorder %s17, 4
      %s27 = sphi 0, %s29
      %s30 = sphi 0, %s27
      %s31 = sphi 0, %s30
      %s47 = sphi 0, %s31
      %s53 = sphi 0, %s55
      %s56 = sphi 0, %s53
      %s57 = sphi 0, %s56
      %s73 = sphi 0, %s57
      %s77 = sphi 0, %s77
      %s79 = sphi 0, %s77
      %s80 = sphi 0, %s79
      %s94 = sphi 0, %s80
      %s98 = sphi 0, %s98
      %s100 = sphi 0, %s98
      %s101 = sphi 0, %s100
      %s115 = sphi 0, %s101
      %s119 = sphi 0, %s119
      %s121 = sphi 0, %s119
      %s122 = sphi 0, %s121
      %s136 = sphi 0, %s122
      %s142 = sphi 0, %s144
      %s145 = sphi 0, %s142
      %s146 = sphi 0, %s145
      %s162 = sphi 0, %s146
    $region4: #{tpu_custom_call.1} parent=1 // loop_header_branch
      %20 = sbr.rel (%p18) target = $region8
    $region5: #{tpu_custom_call.1} parent=1 // loop_body
      %s22 = ssub.s32 %s17, 1
      %s23 = ssub.s32 %s17, 2
      %s24 = sadd.s32 %s17, 1
      %s25 = ssub.s32 %s17, %s24
      %p26 = scmp.eq.s32.totalorder %s25, 0
      %s28 = sadd.s32 %s27, 1
      %s29 = scalar_select %p26, %s27, %s28
      %p32 = pneg %p26
      %p33 = scmp.eq.s32.totalorder %s17, 1
      %p34 = por %p32, %p33
      %p35 = scmp.ne.s32.totalorder %s27, %s30
      %p36 = scmp.eq.s32.totalorder %s17, 0
      %p37 = por %p35, %p36
      %p38 = scmp.ne.s32.totalorder %s27, %s30
      %p39 = scmp.eq.s32.totalorder %s22, 1
      %p40 = por %p38, %p39
      %p41 = scmp.ne.s32.totalorder %s30, %s31
      %p42 = scmp.eq.s32.totalorder %s22, 0
      %p43 = por %p41, %p42
      %p44 = scmp.ne.s32.totalorder %s30, %s31
      %p45 = scmp.eq.s32.totalorder %s23, 1
      %p46 = por %p44, %p45
      %p48 = scmp.ne.s32.totalorder %s31, %s47
      %p49 = scmp.eq.s32.totalorder %s23, 0
      %p50 = por %p48, %p49
      %s51 = ssub.s32 %s17, %s24
      %p52 = scmp.eq.s32.totalorder %s51, 0
      %s54 = sadd.s32 %s53, 1
      %s55 = scalar_select %p52, %s53, %s54
      %p58 = pneg %p52
      %p59 = scmp.eq.s32.totalorder %s17, 1
      %p60 = por %p58, %p59
      %p61 = scmp.ne.s32.totalorder %s53, %s56
      %p62 = scmp.eq.s32.totalorder %s17, 0
      %p63 = por %p61, %p62
      %p64 = scmp.ne.s32.totalorder %s53, %s56
      %p65 = scmp.eq.s32.totalorder %s22, 1
      %p66 = por %p64, %p65
      %p67 = scmp.ne.s32.totalorder %s56, %s57
      %p68 = scmp.eq.s32.totalorder %s22, 0
      %p69 = por %p67, %p68
      %p70 = scmp.ne.s32.totalorder %s56, %s57
      %p71 = scmp.eq.s32.totalorder %s23, 1
      %p72 = por %p70, %p71
      %p74 = scmp.ne.s32.totalorder %s57, %s73
      %p75 = scmp.eq.s32.totalorder %s23, 0
      %p76 = por %p74, %p75
      %s78 = sadd.s32 %s77, 1
      %p81 = scmp.eq.s32.totalorder %s17, 1
      %p82 = scmp.ne.s32.totalorder %s77, %s79
      %p83 = scmp.eq.s32.totalorder %s17, 0
      %p84 = por %p82, %p83
      %p85 = scmp.ne.s32.totalorder %s77, %s79
      %p86 = scmp.eq.s32.totalorder %s22, 1
      %p87 = por %p85, %p86
      %p88 = scmp.ne.s32.totalorder %s79, %s80
      %p89 = scmp.eq.s32.totalorder %s22, 0
      %p90 = por %p88, %p89
      %p91 = scmp.ne.s32.totalorder %s79, %s80
      %p92 = scmp.eq.s32.totalorder %s23, 1
      %p93 = por %p91, %p92
      %p95 = scmp.ne.s32.totalorder %s80, %s94
      %p96 = scmp.eq.s32.totalorder %s23, 0
      %p97 = por %p95, %p96
      %s99 = sadd.s32 %s98, 1
      %p102 = scmp.eq.s32.totalorder %s17, 1
      %p103 = scmp.ne.s32.totalorder %s98, %s100
      %p104 = scmp.eq.s32.totalorder %s17, 0
      %p105 = por %p103, %p104
      %p106 = scmp.ne.s32.totalorder %s98, %s100
      %p107 = scmp.eq.s32.totalorder %s22, 1
      %p108 = por %p106, %p107
      %p109 = scmp.ne.s32.totalorder %s100, %s101
      %p110 = scmp.eq.s32.totalorder %s22, 0
      %p111 = por %p109, %p110
      %p112 = scmp.ne.s32.totalorder %s100, %s101
      %p113 = scmp.eq.s32.totalorder %s23, 1
      %p114 = por %p112, %p113
      %p116 = scmp.ne.s32.totalorder %s101, %s115
      %p117 = scmp.eq.s32.totalorder %s23, 0
      %p118 = por %p116, %p117
      %s120 = sadd.s32 %s119, 1
      %p123 = scmp.eq.s32.totalorder %s17, 1
      %p124 = scmp.ne.s32.totalorder %s119, %s121
      %p125 = scmp.eq.s32.totalorder %s17, 0
      %p126 = por %p124, %p125
      %p127 = scmp.ne.s32.totalorder %s119, %s121
      %p128 = scmp.eq.s32.totalorder %s22, 1
      %p129 = por %p127, %p128
      %p130 = scmp.ne.s32.totalorder %s121, %s122
      %p131 = scmp.eq.s32.totalorder %s22, 0
      %p132 = por %p130, %p131
      %p133 = scmp.ne.s32.totalorder %s121, %s122
      %p134 = scmp.eq.s32.totalorder %s23, 1
      %p135 = por %p133, %p134
      %p137 = scmp.ne.s32.totalorder %s122, %s136
      %p138 = scmp.eq.s32.totalorder %s23, 0
      %p139 = por %p137, %p138
      %s140 = ssub.s32 %s17, %s24
      %p141 = scmp.eq.s32.totalorder %s140, 0
      %s143 = sadd.s32 %s142, 1
      %s144 = scalar_select %p141, %s142, %s143
      %p147 = pneg %p141
      %p148 = scmp.eq.s32.totalorder %s17, 1
      %p149 = por %p147, %p148
      %p150 = scmp.ne.s32.totalorder %s142, %s145
      %p151 = scmp.eq.s32.totalorder %s17, 0
      %p152 = por %p150, %p151
      %p153 = scmp.ne.s32.totalorder %s142, %s145
      %p154 = scmp.eq.s32.totalorder %s22, 1
      %p155 = por %p153, %p154
      %p156 = scmp.ne.s32.totalorder %s145, %s146
      %p157 = scmp.eq.s32.totalorder %s22, 0
      %p158 = por %p156, %p157
      %p159 = scmp.ne.s32.totalorder %s145, %s146
      %p160 = scmp.eq.s32.totalorder %s23, 1
      %p161 = por %p159, %p160
      %p163 = scmp.ne.s32.totalorder %s146, %s162
      %p164 = scmp.eq.s32.totalorder %s23, 0
      %p165 = por %p163, %p164
      %p166 = scmp.le.s32.totalorder 1, %s17
      %p167 = scmp.lt.s32.totalorder %s17, 3
      %p168 = pnand %p166, %p167
      %p169 = pneg %p168
      // Predicated region
      $region9: #{tpu_custom_call.1} parent=5 // pred_check
        _
      $region10: #{tpu_custom_call.1} parent=5 // pred_check_branch
        %171 = sbr.rel (%p168) target = $region12
      $region11: #{tpu_custom_call.1} parent=5 // pred_region
        %s172 = ssub.s32 %s17, 1
        // Predicated region
        $region13: #{tpu_custom_call.1} parent=11 // pred_check
          %p173 = pneg %p90
        $region14: #{tpu_custom_call.1} parent=11 // pred_check_branch
          %175 = sbr.rel (%p173) target = $region16
        $region15: #{tpu_custom_call.1} parent=11 // pred_region
          _
        $region16: #{tpu_custom_call.1} parent=11 // pred_fallthru
          _
        // Predicated region
        $region17: #{tpu_custom_call.1} parent=11 // pred_check
          %p176 = pneg %p111
        $region18: #{tpu_custom_call.1} parent=11 // pred_check_branch
          %178 = sbr.rel (%p176) target = $region20
        $region19: #{tpu_custom_call.1} parent=11 // pred_region
          _
        $region20: #{tpu_custom_call.1} parent=11 // pred_fallthru
          _
        // Predicated region
        $region21: #{tpu_custom_call.1} parent=11 // pred_check
          %p179 = pneg %p132
        $region22: #{tpu_custom_call.1} parent=11 // pred_check_branch
          %181 = sbr.rel (%p179) target = $region24
        $region23: #{tpu_custom_call.1} parent=11 // pred_region
          _
        $region24: #{tpu_custom_call.1} parent=11 // pred_fallthru
          _
      $region12: #{tpu_custom_call.1} parent=5 // pred_fallthru
        _
      %p182 = scmp.lt.s32.totalorder %s17, 2
      // Predicated region
      $region25: #{tpu_custom_call.1} parent=5 // pred_check
        %p183 = pneg %p182
      $region26: #{tpu_custom_call.1} parent=5 // pred_check_branch
        %185 = sbr.rel (%p183) target = $region28
      $region27: #{tpu_custom_call.1} parent=5 // pred_region
        // Predicated region
        $region29: #{tpu_custom_call.1} parent=27 // pred_check
          %p186 = pneg %p37
        $region30: #{tpu_custom_call.1} parent=27 // pred_check_branch
          %188 = sbr.rel (%p186) target = $region32
        $region31: #{tpu_custom_call.1} parent=27 // pred_region
          %s189 = smul.u32 16, %s17
          %p190 = scmp.lt.s32.totalorder %s189, 31
          %s191 = scalar_select %p190, %s189, 31
          %s192 = smul.addr %s191, 4
          %s193 = scalar_lea.vmem %s0, %s192
          %s194 = smul.u32 16, %s17
        $region32: #{tpu_custom_call.1} parent=27 // pred_fallthru
          _
        // Predicated region
        $region33: #{tpu_custom_call.1} parent=27 // pred_check
          %p195 = pneg %p63
        $region34: #{tpu_custom_call.1} parent=27 // pred_check_branch
          %197 = sbr.rel (%p195) target = $region36
        $region35: #{tpu_custom_call.1} parent=27 // pred_region
          %s198 = sand.u32 %s53, 1
          %s199 = scalar_lea.sflag [#allocation3], %s198
          %s200 = sand.u32 %s53, 1
          %s201 = smul.addr %s200, 768
          %s202 = scalar_lea.vmem [#allocation2], %s201
          %s203 = smul.u32 16, %s17
          %s205 = ssub.s32 12288, 12288
          %206 = vsyncadd %s199, %s205
          %s207 = smul.addr %s203, 12
          %s208 = smul.addr %s207, 64
          %s209 = scalar_lea.hbm %s1, %s208
          %s210 = sshll.u32 %s202, 4
          %s211 = int_to_ptr.vmem [resolvable:$true] %s210
          %216 = dma.hbm_to_vmem [thread:$0]  %s209, 12288, %s211, %s199, 768, 768, 48
        $region36: #{tpu_custom_call.1} parent=27 // pred_fallthru
          _
      $region28: #{tpu_custom_call.1} parent=5 // pred_fallthru
        _
      %p217 = scmp.le.s32.totalorder 1, %s17
      %p218 = scmp.lt.s32.totalorder %s17, 3
      %p219 = pnand %p217, %p218
      %p220 = pneg %p219
      // Predicated region
      $region37: #{tpu_custom_call.1} parent=5 // pred_check
        _
      $region38: #{tpu_custom_call.1} parent=5 // pred_check_branch
        %222 = sbr.rel (%p219) target = $region40
      $region39: #{tpu_custom_call.1} parent=5 // pred_region
        %s223 = ssub.s32 %s17, 1
        %s224 = sand.u32 %s56, 1
        %s225 = scalar_lea.sflag [#allocation3], %s224
        %s226 = sand.u32 %s56, 1
        %s227 = smul.addr %s226, 768
        %s228 = scalar_lea.vmem [#allocation2], %s227
        // Predicated region
        $region41: #{tpu_custom_call.1} parent=39 // pred_check
          %p229 = pneg %p69
        $region42: #{tpu_custom_call.1} parent=39 // pred_check_branch
          %231 = sbr.rel (%p229) target = $region44
        $region43: #{tpu_custom_call.1} parent=39 // pred_region
          %232 = dma.done %s225, 12288
        $region44: #{tpu_custom_call.1} parent=39 // pred_fallthru
          _
        %s233 = smul.u32 16, %s22
        %p234 = scmp.lt.s32.totalorder %s233, 31
        %s235 = scalar_select %p234, %s233, 31
        %s236 = smul.addr %s235, 4
        %s237 = scalar_lea.vmem %s0, %s236
        %p238 = pneg %p43
        %p239 = pneg %p40
        %s240 = sand.u32 %s56, 1
        %s241 = scalar_lea.sflag [#allocation3], %s240
        %s242 = sand.u32 %s56, 1
        %s243 = smul.addr %s242, 768
        %s244 = scalar_lea.vmem [#allocation2], %s243
        %p245 = pneg %p69
        %p246 = pneg %p66
        %p247 = pneg %p90
        %p248 = pneg %p87
        %p249 = pneg %p111
        %p250 = pneg %p108
        %p251 = pneg %p132
        %p252 = pneg %p129
        %p253 = pneg %p158
        %p254 = pneg %p155
        %s255 = sand.u32 %s145, 1
        %s256 = scalar_lea.sflag [#allocation4], %s255
        %s257 = sand.u32 %s145, 1
        %s258 = smul.addr %s257, 64
        %s259 = scalar_lea.vmem [#allocation5], %s258
        %s260 = smul.u32 16, %s22
        %p261 = scmp.lt.s32.totalorder %s260, 31
        %s262 = scalar_select %p261, %s260, 31
        %s263 = smul.addr %s262, 4
        %s264 = scalar_lea.vmem %s0, %s263
        %s265 = smul.u32 16, %s22
        %s266 = smul.u32 16, %s22
        %s267 = smul.u32 16, %s22
        %v269 = vld [vmem:[%s4] sm:$0x3]
        %v270 = vld [vmem:[%s264] sm:$0xf]
        %v271 = vld [vmem:[%s264 + $0x4] sm:$0xf]
        %v272 = vld [vmem:[%s264 + $0x8] sm:$0xf]
        %v273 = vld [vmem:[%s264 + $0xc] sm:$0xf]
        %v274 = vld [vmem:[%s264 + $0x10] sm:$0xf]
        %v275 = vld [vmem:[%s264 + $0x14] sm:$0xf]
        %v276 = vld [vmem:[%s264 + $0x18] sm:$0xf]
        %v277 = vld [vmem:[%s264 + $0x1c] sm:$0xf]
        %v278 = vld [vmem:[%s264 + $0x20] sm:$0xf]
        %v279 = vld [vmem:[%s264 + $0x24] sm:$0xf]
        %v280 = vld [vmem:[%s264 + $0x28] sm:$0xf]
        %v281 = vld [vmem:[%s264 + $0x2c] sm:$0xf]
        %v282 = vld [vmem:[%s264 + $0x30] sm:$0xf]
        %v283 = vld [vmem:[%s264 + $0x34] sm:$0xf]
        %v284 = vld [vmem:[%s264 + $0x38] sm:$0xf]
        %v285 = vld [vmem:[%s264 + $0x3c] sm:$0xf]
        %v286 = vld [vmem:[%s228] sm:$0xff]
        %v287 = vld [vmem:[%s228 + $0x8] sm:$0xff]
        %v288 = vld [vmem:[%s228 + $0x10] sm:$0xff]
        %v289 = vld [vmem:[%s228 + $0x18] sm:$0xff]
        %v290 = vld [vmem:[%s228 + $0x20] sm:$0xff]
        %v291 = vld [vmem:[%s228 + $0x28] sm:$0xff]
        %v292 = vld [vmem:[%s228 + $0x30] sm:$0xff]
        %v293 = vld [vmem:[%s228 + $0x38] sm:$0xff]
        %v294 = vld [vmem:[%s228 + $0x40] sm:$0xff]
        %v295 = vld [vmem:[%s228 + $0x48] sm:$0xff]
        %v296 = vld [vmem:[%s228 + $0x50] sm:$0xff]
        %v297 = vld [vmem:[%s228 + $0x58] sm:$0xff]
        %v298 = vld [vmem:[%s228 + $0x60] sm:$0xff]
        %v299 = vld [vmem:[%s228 + $0x68] sm:$0xff]
        %v300 = vld [vmem:[%s228 + $0x70] sm:$0xff]
        %v301 = vld [vmem:[%s228 + $0x78] sm:$0xff]
        %v302 = vld [vmem:[%s228 + $0x80] sm:$0xff]
        %v303 = vld [vmem:[%s228 + $0x88] sm:$0xff]
        %v304 = vld [vmem:[%s228 + $0x90] sm:$0xff]
        %v305 = vld [vmem:[%s228 + $0x98] sm:$0xff]
        %v306 = vld [vmem:[%s228 + $0xa0] sm:$0xff]
        %v307 = vld [vmem:[%s228 + $0xa8] sm:$0xff]
        %v308 = vld [vmem:[%s228 + $0xb0] sm:$0xff]
        %v309 = vld [vmem:[%s228 + $0xb8] sm:$0xff]
        %v310 = vld [vmem:[%s228 + $0xc0] sm:$0xff]
        %v311 = vld [vmem:[%s228 + $0xc8] sm:$0xff]
        %v312 = vld [vmem:[%s228 + $0xd0] sm:$0xff]
        %v313 = vld [vmem:[%s228 + $0xd8] sm:$0xff]
        %v314 = vld [vmem:[%s228 + $0xe0] sm:$0xff]
        %v315 = vld [vmem:[%s228 + $0xe8] sm:$0xff]
        %v316 = vld [vmem:[%s228 + $0xf0] sm:$0xff]
        %v317 = vld [vmem:[%s228 + $0xf8] sm:$0xff]
        %v318 = vld [vmem:[%s228 + $0x100] sm:$0xff]
        %v319 = vld [vmem:[%s228 + $0x108] sm:$0xff]
        %v320 = vld [vmem:[%s228 + $0x110] sm:$0xff]
        %v321 = vld [vmem:[%s228 + $0x118] sm:$0xff]
        %v322 = vld [vmem:[%s228 + $0x120] sm:$0xff]
        %v323 = vld [vmem:[%s228 + $0x128] sm:$0xff]
        %v324 = vld [vmem:[%s228 + $0x130] sm:$0xff]
        %v325 = vld [vmem:[%s228 + $0x138] sm:$0xff]
        %v326 = vld [vmem:[%s228 + $0x140] sm:$0xff]
        %v327 = vld [vmem:[%s228 + $0x148] sm:$0xff]
        %v328 = vld [vmem:[%s228 + $0x150] sm:$0xff]
        %v329 = vld [vmem:[%s228 + $0x158] sm:$0xff]
        %v330 = vld [vmem:[%s228 + $0x160] sm:$0xff]
        %v331 = vld [vmem:[%s228 + $0x168] sm:$0xff]
        %v332 = vld [vmem:[%s228 + $0x170] sm:$0xff]
        %v333 = vld [vmem:[%s228 + $0x178] sm:$0xff]
        %v334 = vld [vmem:[%s228 + $0x180] sm:$0xff]
        %v335 = vld [vmem:[%s228 + $0x188] sm:$0xff]
        %v336 = vld [vmem:[%s228 + $0x190] sm:$0xff]
        %v337 = vld [vmem:[%s228 + $0x198] sm:$0xff]
        %v338 = vld [vmem:[%s228 + $0x1a0] sm:$0xff]
        %v339 = vld [vmem:[%s228 + $0x1a8] sm:$0xff]
        %v340 = vld [vmem:[%s228 + $0x1b0] sm:$0xff]
        %v341 = vld [vmem:[%s228 + $0x1b8] sm:$0xff]
        %v342 = vld [vmem:[%s228 + $0x1c0] sm:$0xff]
        %v343 = vld [vmem:[%s228 + $0x1c8] sm:$0xff]
        %v344 = vld [vmem:[%s228 + $0x1d0] sm:$0xff]
        %v345 = vld [vmem:[%s228 + $0x1d8] sm:$0xff]
        %v346 = vld [vmem:[%s228 + $0x1e0] sm:$0xff]
        %v347 = vld [vmem:[%s228 + $0x1e8] sm:$0xff]
        %v348 = vld [vmem:[%s228 + $0x1f0] sm:$0xff]
        %v349 = vld [vmem:[%s228 + $0x1f8] sm:$0xff]
        %v350 = vld [vmem:[%s228 + $0x200] sm:$0xff]
        %v351 = vld [vmem:[%s228 + $0x208] sm:$0xff]
        %v352 = vld [vmem:[%s228 + $0x210] sm:$0xff]
        %v353 = vld [vmem:[%s228 + $0x218] sm:$0xff]
        %v354 = vld [vmem:[%s228 + $0x220] sm:$0xff]
        %v355 = vld [vmem:[%s228 + $0x228] sm:$0xff]
        %v356 = vld [vmem:[%s228 + $0x230] sm:$0xff]
        %v357 = vld [vmem:[%s228 + $0x238] sm:$0xff]
        %v358 = vld [vmem:[%s228 + $0x240] sm:$0xff]
        %v359 = vld [vmem:[%s228 + $0x248] sm:$0xff]
        %v360 = vld [vmem:[%s228 + $0x250] sm:$0xff]
        %v361 = vld [vmem:[%s228 + $0x258] sm:$0xff]
        %v362 = vld [vmem:[%s228 + $0x260] sm:$0xff]
        %v363 = vld [vmem:[%s228 + $0x268] sm:$0xff]
        %v364 = vld [vmem:[%s228 + $0x270] sm:$0xff]
        %v365 = vld [vmem:[%s228 + $0x278] sm:$0xff]
        %v366 = vld [vmem:[%s228 + $0x280] sm:$0xff]
        %v367 = vld [vmem:[%s228 + $0x288] sm:$0xff]
        %v368 = vld [vmem:[%s228 + $0x290] sm:$0xff]
        %v369 = vld [vmem:[%s228 + $0x298] sm:$0xff]
        %v370 = vld [vmem:[%s228 + $0x2a0] sm:$0xff]
        %v371 = vld [vmem:[%s228 + $0x2a8] sm:$0xff]
        %v372 = vld [vmem:[%s228 + $0x2b0] sm:$0xff]
        %v373 = vld [vmem:[%s228 + $0x2b8] sm:$0xff]
        %v374 = vld [vmem:[%s228 + $0x2c0] sm:$0xff]
        %v375 = vld [vmem:[%s228 + $0x2c8] sm:$0xff]
        %v376 = vld [vmem:[%s228 + $0x2d0] sm:$0xff]
        %v377 = vld [vmem:[%s228 + $0x2d8] sm:$0xff]
        %v378 = vld [vmem:[%s228 + $0x2e0] sm:$0xff]
        %v379 = vld [vmem:[%s228 + $0x2e8] sm:$0xff]
        %v380 = vld [vmem:[%s228 + $0x2f0] sm:$0xff]
        %v381 = vld [vmem:[%s228 + $0x2f8] sm:$0xff]
        %v382 = vld [vmem:[%s2] sm:$0xf]
        %v383 = vld [vmem:[%s2 + $0x4] sm:$0xf]
        %v384 = vld [vmem:[%s2 + $0x8] sm:$0xf]
        %v385 = vld [vmem:[%s2 + $0xc] sm:$0xf]
        %v386 = vld [vmem:[%s2 + $0x10] sm:$0xf]
        %v387 = vld [vmem:[%s2 + $0x14] sm:$0xf]
        %v388 = vld [vmem:[%s2 + $0x18] sm:$0xf]
        %v389 = vld [vmem:[%s2 + $0x1c] sm:$0xf]
        %v390 = vld [vmem:[%s2 + $0x20] sm:$0xf]
        %v391 = vld [vmem:[%s2 + $0x24] sm:$0xf]
        %v392 = vld [vmem:[%s2 + $0x28] sm:$0xf]
        %v393 = vld [vmem:[%s2 + $0x2c] sm:$0xf]
        %v394 = vld [vmem:[%s2 + $0x30] sm:$0xf]
        %v395 = vld [vmem:[%s2 + $0x34] sm:$0xf]
        %v396 = vld [vmem:[%s2 + $0x38] sm:$0xf]
        %v397 = vld [vmem:[%s2 + $0x3c] sm:$0xf]
        %v398 = vld [vmem:[%s2 + $0x40] sm:$0xf]
        %v399 = vld [vmem:[%s2 + $0x44] sm:$0xf]
        %v400 = vld [vmem:[%s2 + $0x48] sm:$0xf]
        %v401 = vld [vmem:[%s2 + $0x4c] sm:$0xf]
        %v402 = vld [vmem:[%s2 + $0x50] sm:$0xf]
        %v403 = vld [vmem:[%s2 + $0x54] sm:$0xf]
        %v404 = vld [vmem:[%s2 + $0x58] sm:$0xf]
        %v405 = vld [vmem:[%s2 + $0x5c] sm:$0xf]
        %v406 = vld [vmem:[%s2 + $0x60] sm:$0xf]
        %v407 = vld [vmem:[%s2 + $0x64] sm:$0xf]
        %v408 = vld [vmem:[%s2 + $0x68] sm:$0xf]
        %v409 = vld [vmem:[%s2 + $0x6c] sm:$0xf]
        %v410 = vld [vmem:[%s2 + $0x70] sm:$0xf]
        %v411 = vld [vmem:[%s2 + $0x74] sm:$0xf]
        %v412 = vld [vmem:[%s2 + $0x78] sm:$0xf]
        %v413 = vld [vmem:[%s2 + $0x7c] sm:$0xf]
        %v414 = vld [vmem:[%s2 + $0x80] sm:$0xf]
        %v415 = vld [vmem:[%s2 + $0x84] sm:$0xf]
        %v416 = vld [vmem:[%s2 + $0x88] sm:$0xf]
        %v417 = vld [vmem:[%s2 + $0x8c] sm:$0xf]
        %v418 = vld [vmem:[%s2 + $0x90] sm:$0xf]
        %v419 = vld [vmem:[%s2 + $0x94] sm:$0xf]
        %v420 = vld [vmem:[%s2 + $0x98] sm:$0xf]
        %v421 = vld [vmem:[%s2 + $0x9c] sm:$0xf]
        %v422 = vld [vmem:[%s2 + $0xa0] sm:$0xf]
        %v423 = vld [vmem:[%s2 + $0xa4] sm:$0xf]
        %v424 = vld [vmem:[%s2 + $0xa8] sm:$0xf]
        %v425 = vld [vmem:[%s2 + $0xac] sm:$0xf]
        %v426 = vld [vmem:[%s2 + $0xb0] sm:$0xf]
        %v427 = vld [vmem:[%s2 + $0xb4] sm:$0xf]
        %v428 = vld [vmem:[%s2 + $0xb8] sm:$0xf]
        %v429 = vld [vmem:[%s2 + $0xbc] sm:$0xf]
        %v430 = vld [vmem:[%s2 + $0xc0] sm:$0xf]
        %v431 = vld [vmem:[%s2 + $0xc4] sm:$0xf]
        %v432 = vld [vmem:[%s2 + $0xc8] sm:$0xf]
        %v433 = vld [vmem:[%s2 + $0xcc] sm:$0xf]
        %v434 = vld [vmem:[%s2 + $0xd0] sm:$0xf]
        %v435 = vld [vmem:[%s2 + $0xd4] sm:$0xf]
        %v436 = vld [vmem:[%s2 + $0xd8] sm:$0xf]
        %v437 = vld [vmem:[%s2 + $0xdc] sm:$0xf]
        %v438 = vld [vmem:[%s2 + $0xe0] sm:$0xf]
        %v439 = vld [vmem:[%s2 + $0xe4] sm:$0xf]
        %v440 = vld [vmem:[%s2 + $0xe8] sm:$0xf]
        %v441 = vld [vmem:[%s2 + $0xec] sm:$0xf]
        %v442 = vld [vmem:[%s2 + $0xf0] sm:$0xf]
        %v443 = vld [vmem:[%s2 + $0xf4] sm:$0xf]
        %v444 = vld [vmem:[%s2 + $0xf8] sm:$0xf]
        %v445 = vld [vmem:[%s2 + $0xfc] sm:$0xf]
        %v446 = vld [vmem:[%s2 + $0x100] sm:$0xf]
        %v447 = vld [vmem:[%s2 + $0x104] sm:$0xf]
        %v448 = vld [vmem:[%s2 + $0x108] sm:$0xf]
        %v449 = vld [vmem:[%s2 + $0x10c] sm:$0xf]
        %v450 = vld [vmem:[%s2 + $0x110] sm:$0xf]
        %v451 = vld [vmem:[%s2 + $0x114] sm:$0xf]
        %v452 = vld [vmem:[%s2 + $0x118] sm:$0xf]
        %v453 = vld [vmem:[%s2 + $0x11c] sm:$0xf]
        %v454 = vld [vmem:[%s2 + $0x120] sm:$0xf]
        %v455 = vld [vmem:[%s2 + $0x124] sm:$0xf]
        %v456 = vld [vmem:[%s2 + $0x128] sm:$0xf]
        %v457 = vld [vmem:[%s2 + $0x12c] sm:$0xf]
        %v458 = vld [vmem:[%s2 + $0x130] sm:$0xf]
        %v459 = vld [vmem:[%s2 + $0x134] sm:$0xf]
        %v460 = vld [vmem:[%s2 + $0x138] sm:$0xf]
        %v461 = vld [vmem:[%s2 + $0x13c] sm:$0xf]
        %v462 = vld [vmem:[%s2 + $0x140] sm:$0xf]
        %v463 = vld [vmem:[%s2 + $0x144] sm:$0xf]
        %v464 = vld [vmem:[%s2 + $0x148] sm:$0xf]
        %v465 = vld [vmem:[%s2 + $0x14c] sm:$0xf]
        %v466 = vld [vmem:[%s2 + $0x150] sm:$0xf]
        %v467 = vld [vmem:[%s2 + $0x154] sm:$0xf]
        %v468 = vld [vmem:[%s2 + $0x158] sm:$0xf]
        %v469 = vld [vmem:[%s2 + $0x15c] sm:$0xf]
        %v470 = vld [vmem:[%s2 + $0x160] sm:$0xf]
        %v471 = vld [vmem:[%s2 + $0x164] sm:$0xf]
        %v472 = vld [vmem:[%s2 + $0x168] sm:$0xf]
        %v473 = vld [vmem:[%s2 + $0x16c] sm:$0xf]
        %v474 = vld [vmem:[%s2 + $0x170] sm:$0xf]
        %v475 = vld [vmem:[%s2 + $0x174] sm:$0xf]
        %v476 = vld [vmem:[%s2 + $0x178] sm:$0xf]
        %v477 = vld [vmem:[%s2 + $0x17c] sm:$0xf]
        %v478 = vld [vmem:[%s2 + $0x180] sm:$0xf]
        %v479 = vld [vmem:[%s2 + $0x184] sm:$0xf]
        %v480 = vld [vmem:[%s2 + $0x188] sm:$0xf]
        %v481 = vld [vmem:[%s2 + $0x18c] sm:$0xf]
        %v482 = vld [vmem:[%s2 + $0x190] sm:$0xf]
        %v483 = vld [vmem:[%s2 + $0x194] sm:$0xf]
        %v484 = vld [vmem:[%s2 + $0x198] sm:$0xf]
        %v485 = vld [vmem:[%s2 + $0x19c] sm:$0xf]
        %v486 = vld [vmem:[%s2 + $0x1a0] sm:$0xf]
        %v487 = vld [vmem:[%s2 + $0x1a4] sm:$0xf]
        %v488 = vld [vmem:[%s2 + $0x1a8] sm:$0xf]
        %v489 = vld [vmem:[%s2 + $0x1ac] sm:$0xf]
        %v490 = vld [vmem:[%s2 + $0x1b0] sm:$0xf]
        %v491 = vld [vmem:[%s2 + $0x1b4] sm:$0xf]
        %v492 = vld [vmem:[%s2 + $0x1b8] sm:$0xf]
        %v493 = vld [vmem:[%s2 + $0x1bc] sm:$0xf]
        %v494 = vld [vmem:[%s2 + $0x1c0] sm:$0xf]
        %v495 = vld [vmem:[%s2 + $0x1c4] sm:$0xf]
        %v496 = vld [vmem:[%s2 + $0x1c8] sm:$0xf]
        %v497 = vld [vmem:[%s2 + $0x1cc] sm:$0xf]
        %v498 = vld [vmem:[%s2 + $0x1d0] sm:$0xf]
        %v499 = vld [vmem:[%s2 + $0x1d4] sm:$0xf]
        %v500 = vld [vmem:[%s2 + $0x1d8] sm:$0xf]
        %v501 = vld [vmem:[%s2 + $0x1dc] sm:$0xf]
        %v502 = vld [vmem:[%s2 + $0x1e0] sm:$0xf]
        %v503 = vld [vmem:[%s2 + $0x1e4] sm:$0xf]
        %v504 = vld [vmem:[%s2 + $0x1e8] sm:$0xf]
        %v505 = vld [vmem:[%s2 + $0x1ec] sm:$0xf]
        %v506 = vld [vmem:[%s2 + $0x1f0] sm:$0xf]
        %v507 = vld [vmem:[%s2 + $0x1f4] sm:$0xf]
        %v508 = vld [vmem:[%s2 + $0x1f8] sm:$0xf]
        %v509 = vld [vmem:[%s2 + $0x1fc] sm:$0xf]
        %v510 = vld [vmem:[%s2 + $0x200] sm:$0xf]
        %v511 = vld [vmem:[%s2 + $0x204] sm:$0xf]
        %v512 = vld [vmem:[%s2 + $0x208] sm:$0xf]
        %v513 = vld [vmem:[%s2 + $0x20c] sm:$0xf]
        %v514 = vld [vmem:[%s2 + $0x210] sm:$0xf]
        %v515 = vld [vmem:[%s2 + $0x214] sm:$0xf]
        %v516 = vld [vmem:[%s2 + $0x218] sm:$0xf]
        %v517 = vld [vmem:[%s2 + $0x21c] sm:$0xf]
        %v518 = vld [vmem:[%s2 + $0x220] sm:$0xf]
        %v519 = vld [vmem:[%s2 + $0x224] sm:$0xf]
        %v520 = vld [vmem:[%s2 + $0x228] sm:$0xf]
        %v521 = vld [vmem:[%s2 + $0x22c] sm:$0xf]
        %v522 = vld [vmem:[%s2 + $0x230] sm:$0xf]
        %v523 = vld [vmem:[%s2 + $0x234] sm:$0xf]
        %v524 = vld [vmem:[%s2 + $0x238] sm:$0xf]
        %v525 = vld [vmem:[%s2 + $0x23c] sm:$0xf]
        %v526 = vld [vmem:[%s2 + $0x240] sm:$0xf]
        %v527 = vld [vmem:[%s2 + $0x244] sm:$0xf]
        %v528 = vld [vmem:[%s2 + $0x248] sm:$0xf]
        %v529 = vld [vmem:[%s2 + $0x24c] sm:$0xf]
        %v530 = vld [vmem:[%s2 + $0x250] sm:$0xf]
        %v531 = vld [vmem:[%s2 + $0x254] sm:$0xf]
        %v532 = vld [vmem:[%s2 + $0x258] sm:$0xf]
        %v533 = vld [vmem:[%s2 + $0x25c] sm:$0xf]
        %v534 = vld [vmem:[%s2 + $0x260] sm:$0xf]
        %v535 = vld [vmem:[%s2 + $0x264] sm:$0xf]
        %v536 = vld [vmem:[%s2 + $0x268] sm:$0xf]
        %v537 = vld [vmem:[%s2 + $0x26c] sm:$0xf]
        %v538 = vld [vmem:[%s2 + $0x270] sm:$0xf]
        %v539 = vld [vmem:[%s2 + $0x274] sm:$0xf]
        %v540 = vld [vmem:[%s2 + $0x278] sm:$0xf]
        %v541 = vld [vmem:[%s2 + $0x27c] sm:$0xf]
        %v542 = vld [vmem:[%s2 + $0x280] sm:$0xf]
        %v543 = vld [vmem:[%s2 + $0x284] sm:$0xf]
        %v544 = vld [vmem:[%s2 + $0x288] sm:$0xf]
        %v545 = vld [vmem:[%s2 + $0x28c] sm:$0xf]
        %v546 = vld [vmem:[%s2 + $0x290] sm:$0xf]
        %v547 = vld [vmem:[%s2 + $0x294] sm:$0xf]
        %v548 = vld [vmem:[%s2 + $0x298] sm:$0xf]
        %v549 = vld [vmem:[%s2 + $0x29c] sm:$0xf]
        %v550 = vld [vmem:[%s2 + $0x2a0] sm:$0xf]
        %v551 = vld [vmem:[%s2 + $0x2a4] sm:$0xf]
        %v552 = vld [vmem:[%s2 + $0x2a8] sm:$0xf]
        %v553 = vld [vmem:[%s2 + $0x2ac] sm:$0xf]
        %v554 = vld [vmem:[%s2 + $0x2b0] sm:$0xf]
        %v555 = vld [vmem:[%s2 + $0x2b4] sm:$0xf]
        %v556 = vld [vmem:[%s2 + $0x2b8] sm:$0xf]
        %v557 = vld [vmem:[%s2 + $0x2bc] sm:$0xf]
        %v558 = vld [vmem:[%s2 + $0x2c0] sm:$0xf]
        %v559 = vld [vmem:[%s2 + $0x2c4] sm:$0xf]
        %v560 = vld [vmem:[%s2 + $0x2c8] sm:$0xf]
        %v561 = vld [vmem:[%s2 + $0x2cc] sm:$0xf]
        %v562 = vld [vmem:[%s2 + $0x2d0] sm:$0xf]
        %v563 = vld [vmem:[%s2 + $0x2d4] sm:$0xf]
        %v564 = vld [vmem:[%s2 + $0x2d8] sm:$0xf]
        %v565 = vld [vmem:[%s2 + $0x2dc] sm:$0xf]
        %v566 = vld [vmem:[%s2 + $0x2e0] sm:$0xf]
        %v567 = vld [vmem:[%s2 + $0x2e4] sm:$0xf]
        %v568 = vld [vmem:[%s2 + $0x2e8] sm:$0xf]
        %v569 = vld [vmem:[%s2 + $0x2ec] sm:$0xf]
        %v570 = vld [vmem:[%s2 + $0x2f0] sm:$0xf]
        %v571 = vld [vmem:[%s2 + $0x2f4] sm:$0xf]
        %v572 = vld [vmem:[%s2 + $0x2f8] sm:$0xf]
        %v573 = vld [vmem:[%s2 + $0x2fc] sm:$0xf]
        %v670 = vunpack.c.l.b16 %v286
        %v671 = vunpack.c.h.b16 %v286
        %v672 = vunpack.c.l.b16 %v287
        %v673 = vunpack.c.h.b16 %v287
        %v674 = vunpack.c.l.b16 %v288
        %v675 = vunpack.c.h.b16 %v288
        %v676 = vunpack.c.l.b16 %v289
        %v677 = vunpack.c.h.b16 %v289
        %v678 = vunpack.c.l.b16 %v290
        %v679 = vunpack.c.h.b16 %v290
        %v680 = vunpack.c.l.b16 %v291
        %v681 = vunpack.c.h.b16 %v291
        %v682 = vunpack.c.l.b16 %v292
        %v683 = vunpack.c.h.b16 %v292
        %v684 = vunpack.c.l.b16 %v293
        %v685 = vunpack.c.h.b16 %v293
        %v686 = vunpack.c.l.b16 %v294
        %v687 = vunpack.c.h.b16 %v294
        %v688 = vunpack.c.l.b16 %v295
        %v689 = vunpack.c.h.b16 %v295
        %v690 = vunpack.c.l.b16 %v296
        %v691 = vunpack.c.h.b16 %v296
        %v692 = vunpack.c.l.b16 %v297
        %v693 = vunpack.c.h.b16 %v297
        %v694 = vunpack.c.l.b16 %v298
        %v695 = vunpack.c.h.b16 %v298
        %v696 = vunpack.c.l.b16 %v299
        %v697 = vunpack.c.h.b16 %v299
        %v698 = vunpack.c.l.b16 %v300
        %v699 = vunpack.c.h.b16 %v300
        %v700 = vunpack.c.l.b16 %v301
        %v701 = vunpack.c.h.b16 %v301
        %v702 = vunpack.c.l.b16 %v302
        %v703 = vunpack.c.h.b16 %v302
        %v704 = vunpack.c.l.b16 %v303
        %v705 = vunpack.c.h.b16 %v303
        %v706 = vunpack.c.l.b16 %v304
        %v707 = vunpack.c.h.b16 %v304
        %v708 = vunpack.c.l.b16 %v305
        %v709 = vunpack.c.h.b16 %v305
        %v710 = vunpack.c.l.b16 %v306
        %v711 = vunpack.c.h.b16 %v306
        %v712 = vunpack.c.l.b16 %v307
        %v713 = vunpack.c.h.b16 %v307
        %v714 = vunpack.c.l.b16 %v308
        %v715 = vunpack.c.h.b16 %v308
        %v716 = vunpack.c.l.b16 %v309
        %v717 = vunpack.c.h.b16 %v309
        %v718 = vunpack.c.l.b16 %v310
        %v719 = vunpack.c.h.b16 %v310
        %v720 = vunpack.c.l.b16 %v311
        %v721 = vunpack.c.h.b16 %v311
        %v722 = vunpack.c.l.b16 %v312
        %v723 = vunpack.c.h.b16 %v312
        %v724 = vunpack.c.l.b16 %v313
        %v725 = vunpack.c.h.b16 %v313
        %v726 = vunpack.c.l.b16 %v314
        %v727 = vunpack.c.h.b16 %v314
        %v728 = vunpack.c.l.b16 %v315
        %v729 = vunpack.c.h.b16 %v315
        %v730 = vunpack.c.l.b16 %v316
        %v731 = vunpack.c.h.b16 %v316
        %v732 = vunpack.c.l.b16 %v317
        %v733 = vunpack.c.h.b16 %v317
        %v734 = vunpack.c.l.b16 %v318
        %v735 = vunpack.c.h.b16 %v318
        %v736 = vunpack.c.l.b16 %v319
        %v737 = vunpack.c.h.b16 %v319
        %v738 = vunpack.c.l.b16 %v320
        %v739 = vunpack.c.h.b16 %v320
        %v740 = vunpack.c.l.b16 %v321
        %v741 = vunpack.c.h.b16 %v321
        %v742 = vunpack.c.l.b16 %v322
        %v743 = vunpack.c.h.b16 %v322
        %v744 = vunpack.c.l.b16 %v323
        %v745 = vunpack.c.h.b16 %v323
        %v746 = vunpack.c.l.b16 %v324
        %v747 = vunpack.c.h.b16 %v324
        %v748 = vunpack.c.l.b16 %v325
        %v749 = vunpack.c.h.b16 %v325
        %v750 = vunpack.c.l.b16 %v326
        %v751 = vunpack.c.h.b16 %v326
        %v752 = vunpack.c.l.b16 %v327
        %v753 = vunpack.c.h.b16 %v327
        %v754 = vunpack.c.l.b16 %v328
        %v755 = vunpack.c.h.b16 %v328
        %v756 = vunpack.c.l.b16 %v329
        %v757 = vunpack.c.h.b16 %v329
        %v758 = vunpack.c.l.b16 %v330
        %v759 = vunpack.c.h.b16 %v330
        %v760 = vunpack.c.l.b16 %v331
        %v761 = vunpack.c.h.b16 %v331
        %v762 = vunpack.c.l.b16 %v332
        %v763 = vunpack.c.h.b16 %v332
        %v764 = vunpack.c.l.b16 %v333
        %v765 = vunpack.c.h.b16 %v333
        %v766 = vunpack.c.l.b16 %v334
        %v767 = vunpack.c.h.b16 %v334
        %v768 = vunpack.c.l.b16 %v335
        %v769 = vunpack.c.h.b16 %v335
        %v770 = vunpack.c.l.b16 %v336
        %v771 = vunpack.c.h.b16 %v336
        %v772 = vunpack.c.l.b16 %v337
        %v773 = vunpack.c.h.b16 %v337
        %v774 = vunpack.c.l.b16 %v338
        %v775 = vunpack.c.h.b16 %v338
        %v776 = vunpack.c.l.b16 %v339
        %v777 = vunpack.c.h.b16 %v339
        %v778 = vunpack.c.l.b16 %v340
        %v779 = vunpack.c.h.b16 %v340
        %v780 = vunpack.c.l.b16 %v341
        %v781 = vunpack.c.h.b16 %v341
        %v782 = vunpack.c.l.b16 %v342
        %v783 = vunpack.c.h.b16 %v342
        %v784 = vunpack.c.l.b16 %v343
        %v785 = vunpack.c.h.b16 %v343
        %v786 = vunpack.c.l.b16 %v344
        %v787 = vunpack.c.h.b16 %v344
        %v788 = vunpack.c.l.b16 %v345
        %v789 = vunpack.c.h.b16 %v345
        %v790 = vunpack.c.l.b16 %v346
        %v791 = vunpack.c.h.b16 %v346
        %v792 = vunpack.c.l.b16 %v347
        %v793 = vunpack.c.h.b16 %v347
        %v794 = vunpack.c.l.b16 %v348
        %v795 = vunpack.c.h.b16 %v348
        %v796 = vunpack.c.l.b16 %v349
        %v797 = vunpack.c.h.b16 %v349
        %v798 = vunpack.c.l.b16 %v350
        %v799 = vunpack.c.h.b16 %v350
        %v800 = vunpack.c.l.b16 %v351
        %v801 = vunpack.c.h.b16 %v351
        %v802 = vunpack.c.l.b16 %v352
        %v803 = vunpack.c.h.b16 %v352
        %v804 = vunpack.c.l.b16 %v353
        %v805 = vunpack.c.h.b16 %v353
        %v806 = vunpack.c.l.b16 %v354
        %v807 = vunpack.c.h.b16 %v354
        %v808 = vunpack.c.l.b16 %v355
        %v809 = vunpack.c.h.b16 %v355
        %v810 = vunpack.c.l.b16 %v356
        %v811 = vunpack.c.h.b16 %v356
        %v812 = vunpack.c.l.b16 %v357
        %v813 = vunpack.c.h.b16 %v357
        %v814 = vunpack.c.l.b16 %v358
        %v815 = vunpack.c.h.b16 %v358
        %v816 = vunpack.c.l.b16 %v359
        %v817 = vunpack.c.h.b16 %v359
        %v818 = vunpack.c.l.b16 %v360
        %v819 = vunpack.c.h.b16 %v360
        %v820 = vunpack.c.l.b16 %v361
        %v821 = vunpack.c.h.b16 %v361
        %v822 = vunpack.c.l.b16 %v362
        %v823 = vunpack.c.h.b16 %v362
        %v824 = vunpack.c.l.b16 %v363
        %v825 = vunpack.c.h.b16 %v363
        %v826 = vunpack.c.l.b16 %v364
        %v827 = vunpack.c.h.b16 %v364
        %v828 = vunpack.c.l.b16 %v365
        %v829 = vunpack.c.h.b16 %v365
        %v830 = vunpack.c.l.b16 %v366
        %v831 = vunpack.c.h.b16 %v366
        %v832 = vunpack.c.l.b16 %v367
        %v833 = vunpack.c.h.b16 %v367
        %v834 = vunpack.c.l.b16 %v368
        %v835 = vunpack.c.h.b16 %v368
        %v836 = vunpack.c.l.b16 %v369
        %v837 = vunpack.c.h.b16 %v369
        %v838 = vunpack.c.l.b16 %v370
        %v839 = vunpack.c.h.b16 %v370
        %v840 = vunpack.c.l.b16 %v371
        %v841 = vunpack.c.h.b16 %v371
        %v842 = vunpack.c.l.b16 %v372
        %v843 = vunpack.c.h.b16 %v372
        %v844 = vunpack.c.l.b16 %v373
        %v845 = vunpack.c.h.b16 %v373
        %v846 = vunpack.c.l.b16 %v374
        %v847 = vunpack.c.h.b16 %v374
        %v848 = vunpack.c.l.b16 %v375
        %v849 = vunpack.c.h.b16 %v375
        %v850 = vunpack.c.l.b16 %v376
        %v851 = vunpack.c.h.b16 %v376
        %v852 = vunpack.c.l.b16 %v377
        %v853 = vunpack.c.h.b16 %v377
        %v854 = vunpack.c.l.b16 %v378
        %v855 = vunpack.c.h.b16 %v378
        %v856 = vunpack.c.l.b16 %v379
        %v857 = vunpack.c.h.b16 %v379
        %v858 = vunpack.c.l.b16 %v380
        %v859 = vunpack.c.h.b16 %v380
        %v860 = vunpack.c.l.b16 %v381
        %v861 = vunpack.c.h.b16 %v381
        %v862 = vpack.c.b16 %v682, %v670
        %v863 = vpack.c.b16 %v683, %v671
        %v864 = vpack.c.b16 %v684, %v672
        %v865 = vpack.c.b16 %v685, %v673
        %v866 = vpack.c.b16 %v686, %v674
        %v867 = vpack.c.b16 %v687, %v675
        %v868 = vpack.c.b16 %v688, %v676
        %v869 = vpack.c.b16 %v689, %v677
        %v870 = vpack.c.b16 %v690, %v678
        %v871 = vpack.c.b16 %v691, %v679
        %v872 = vpack.c.b16 %v692, %v680
        %v873 = vpack.c.b16 %v693, %v681
        %v874 = vpack.c.b16 %v706, %v694
        %v875 = vpack.c.b16 %v707, %v695
        %v876 = vpack.c.b16 %v708, %v696
        %v877 = vpack.c.b16 %v709, %v697
        %v878 = vpack.c.b16 %v710, %v698
        %v879 = vpack.c.b16 %v711, %v699
        %v880 = vpack.c.b16 %v712, %v700
        %v881 = vpack.c.b16 %v713, %v701
        %v882 = vpack.c.b16 %v714, %v702
        %v883 = vpack.c.b16 %v715, %v703
        %v884 = vpack.c.b16 %v716, %v704
        %v885 = vpack.c.b16 %v717, %v705
        %v886 = vpack.c.b16 %v730, %v718
        %v887 = vpack.c.b16 %v731, %v719
        %v888 = vpack.c.b16 %v732, %v720
        %v889 = vpack.c.b16 %v733, %v721
        %v890 = vpack.c.b16 %v734, %v722
        %v891 = vpack.c.b16 %v735, %v723
        %v892 = vpack.c.b16 %v736, %v724
        %v893 = vpack.c.b16 %v737, %v725
        %v894 = vpack.c.b16 %v738, %v726
        %v895 = vpack.c.b16 %v739, %v727
        %v896 = vpack.c.b16 %v740, %v728
        %v897 = vpack.c.b16 %v741, %v729
        %v898 = vpack.c.b16 %v754, %v742
        %v899 = vpack.c.b16 %v755, %v743
        %v900 = vpack.c.b16 %v756, %v744
        %v901 = vpack.c.b16 %v757, %v745
        %v902 = vpack.c.b16 %v758, %v746
        %v903 = vpack.c.b16 %v759, %v747
        %v904 = vpack.c.b16 %v760, %v748
        %v905 = vpack.c.b16 %v761, %v749
        %v906 = vpack.c.b16 %v762, %v750
        %v907 = vpack.c.b16 %v763, %v751
        %v908 = vpack.c.b16 %v764, %v752
        %v909 = vpack.c.b16 %v765, %v753
        %v910 = vpack.c.b16 %v778, %v766
        %v911 = vpack.c.b16 %v779, %v767
        %v912 = vpack.c.b16 %v780, %v768
        %v913 = vpack.c.b16 %v781, %v769
        %v914 = vpack.c.b16 %v782, %v770
        %v915 = vpack.c.b16 %v783, %v771
        %v916 = vpack.c.b16 %v784, %v772
        %v917 = vpack.c.b16 %v785, %v773
        %v918 = vpack.c.b16 %v786, %v774
        %v919 = vpack.c.b16 %v787, %v775
        %v920 = vpack.c.b16 %v788, %v776
        %v921 = vpack.c.b16 %v789, %v777
        %v922 = vpack.c.b16 %v802, %v790
        %v923 = vpack.c.b16 %v803, %v791
        %v924 = vpack.c.b16 %v804, %v792
        %v925 = vpack.c.b16 %v805, %v793
        %v926 = vpack.c.b16 %v806, %v794
        %v927 = vpack.c.b16 %v807, %v795
        %v928 = vpack.c.b16 %v808, %v796
        %v929 = vpack.c.b16 %v809, %v797
        %v930 = vpack.c.b16 %v810, %v798
        %v931 = vpack.c.b16 %v811, %v799
        %v932 = vpack.c.b16 %v812, %v800
        %v933 = vpack.c.b16 %v813, %v801
        %v934 = vpack.c.b16 %v826, %v814
        %v935 = vpack.c.b16 %v827, %v815
        %v936 = vpack.c.b16 %v828, %v816
        %v937 = vpack.c.b16 %v829, %v817
        %v938 = vpack.c.b16 %v830, %v818
        %v939 = vpack.c.b16 %v831, %v819
        %v940 = vpack.c.b16 %v832, %v820
        %v941 = vpack.c.b16 %v833, %v821
        %v942 = vpack.c.b16 %v834, %v822
        %v943 = vpack.c.b16 %v835, %v823
        %v944 = vpack.c.b16 %v836, %v824
        %v945 = vpack.c.b16 %v837, %v825
        %v946 = vpack.c.b16 %v850, %v838
        %v947 = vpack.c.b16 %v851, %v839
        %v948 = vpack.c.b16 %v852, %v840
        %v949 = vpack.c.b16 %v853, %v841
        %v950 = vpack.c.b16 %v854, %v842
        %v951 = vpack.c.b16 %v855, %v843
        %v952 = vpack.c.b16 %v856, %v844
        %v953 = vpack.c.b16 %v857, %v845
        %v954 = vpack.c.b16 %v858, %v846
        %v955 = vpack.c.b16 %v859, %v847
        %v956 = vpack.c.b16 %v860, %v848
        %v957 = vpack.c.b16 %v861, %v849
        %v1246 = vunpack.c.l.b16 %v382
        %v1247 = vunpack.c.l.b16 %v383
        %v1248 = vunpack.c.l.b16 %v384
        %v1249 = vunpack.c.l.b16 %v385
        %v1250 = vunpack.c.l.b16 %v386
        %v1251 = vunpack.c.l.b16 %v387
        %v1252 = vunpack.c.l.b16 %v388
        %v1253 = vunpack.c.l.b16 %v389
        %v1254 = vunpack.c.l.b16 %v390
        %v1255 = vunpack.c.l.b16 %v391
        %v1256 = vunpack.c.l.b16 %v392
        %v1257 = vunpack.c.l.b16 %v393
        %v1258 = vunpack.c.l.b16 %v394
        %v1259 = vunpack.c.l.b16 %v395
        %v1260 = vunpack.c.l.b16 %v396
        %v1261 = vunpack.c.l.b16 %v397
        %v1262 = vunpack.c.l.b16 %v398
        %v1263 = vunpack.c.l.b16 %v399
        %v1264 = vunpack.c.l.b16 %v400
        %v1265 = vunpack.c.l.b16 %v401
        %v1266 = vunpack.c.l.b16 %v402
        %v1267 = vunpack.c.l.b16 %v403
        %v1268 = vunpack.c.l.b16 %v404
        %v1269 = vunpack.c.l.b16 %v405
        %v1270 = vunpack.c.l.b16 %v406
        %v1271 = vunpack.c.l.b16 %v407
        %v1272 = vunpack.c.l.b16 %v408
        %v1273 = vunpack.c.l.b16 %v409
        %v1274 = vunpack.c.l.b16 %v410
        %v1275 = vunpack.c.l.b16 %v411
        %v1276 = vunpack.c.l.b16 %v412
        %v1277 = vunpack.c.l.b16 %v413
        %v1278 = vunpack.c.l.b16 %v414
        %v1279 = vunpack.c.l.b16 %v415
        %v1280 = vunpack.c.l.b16 %v416
        %v1281 = vunpack.c.l.b16 %v417
        %v1282 = vunpack.c.l.b16 %v418
        %v1283 = vunpack.c.l.b16 %v419
        %v1284 = vunpack.c.l.b16 %v420
        %v1285 = vunpack.c.l.b16 %v421
        %v1286 = vunpack.c.l.b16 %v422
        %v1287 = vunpack.c.l.b16 %v423
        %v1288 = vunpack.c.l.b16 %v424
        %v1289 = vunpack.c.l.b16 %v425
        %v1290 = vunpack.c.l.b16 %v426
        %v1291 = vunpack.c.l.b16 %v427
        %v1292 = vunpack.c.l.b16 %v428
        %v1293 = vunpack.c.l.b16 %v429
        %v1294 = vunpack.c.l.b16 %v430
        %v1295 = vunpack.c.l.b16 %v431
        %v1296 = vunpack.c.l.b16 %v432
        %v1297 = vunpack.c.l.b16 %v433
        %v1298 = vunpack.c.l.b16 %v434
        %v1299 = vunpack.c.l.b16 %v435
        %v1300 = vunpack.c.l.b16 %v436
        %v1301 = vunpack.c.l.b16 %v437
        %v1302 = vunpack.c.l.b16 %v438
        %v1303 = vunpack.c.l.b16 %v439
        %v1304 = vunpack.c.l.b16 %v440
        %v1305 = vunpack.c.l.b16 %v441
        %v1306 = vunpack.c.l.b16 %v442
        %v1307 = vunpack.c.l.b16 %v443
        %v1308 = vunpack.c.l.b16 %v444
        %v1309 = vunpack.c.l.b16 %v445
        %v1310 = vunpack.c.l.b16 %v446
        %v1311 = vunpack.c.l.b16 %v447
        %v1312 = vunpack.c.l.b16 %v448
        %v1313 = vunpack.c.l.b16 %v449
        %v1314 = vunpack.c.l.b16 %v450
        %v1315 = vunpack.c.l.b16 %v451
        %v1316 = vunpack.c.l.b16 %v452
        %v1317 = vunpack.c.l.b16 %v453
        %v1318 = vunpack.c.l.b16 %v454
        %v1319 = vunpack.c.l.b16 %v455
        %v1320 = vunpack.c.l.b16 %v456
        %v1321 = vunpack.c.l.b16 %v457
        %v1322 = vunpack.c.l.b16 %v458
        %v1323 = vunpack.c.l.b16 %v459
        %v1324 = vunpack.c.l.b16 %v460
        %v1325 = vunpack.c.l.b16 %v461
        %v1326 = vunpack.c.l.b16 %v462
        %v1327 = vunpack.c.l.b16 %v463
        %v1328 = vunpack.c.l.b16 %v464
        %v1329 = vunpack.c.l.b16 %v465
        %v1330 = vunpack.c.l.b16 %v466
        %v1331 = vunpack.c.l.b16 %v467
        %v1332 = vunpack.c.l.b16 %v468
        %v1333 = vunpack.c.l.b16 %v469
        %v1334 = vunpack.c.l.b16 %v470
        %v1335 = vunpack.c.l.b16 %v471
        %v1336 = vunpack.c.l.b16 %v472
        %v1337 = vunpack.c.l.b16 %v473
        %v1338 = vunpack.c.l.b16 %v474
        %v1339 = vunpack.c.l.b16 %v475
        %v1340 = vunpack.c.l.b16 %v476
        %v1341 = vunpack.c.l.b16 %v477
        %v1342 = vunpack.c.l.b16 %v478
        %v1343 = vunpack.c.l.b16 %v479
        %v1344 = vunpack.c.l.b16 %v480
        %v1345 = vunpack.c.l.b16 %v481
        %v1346 = vunpack.c.l.b16 %v482
        %v1347 = vunpack.c.l.b16 %v483
        %v1348 = vunpack.c.l.b16 %v484
        %v1349 = vunpack.c.l.b16 %v485
        %v1350 = vunpack.c.l.b16 %v486
        %v1351 = vunpack.c.l.b16 %v487
        %v1352 = vunpack.c.l.b16 %v488
        %v1353 = vunpack.c.l.b16 %v489
        %v1354 = vunpack.c.l.b16 %v490
        %v1355 = vunpack.c.l.b16 %v491
        %v1356 = vunpack.c.l.b16 %v492
        %v1357 = vunpack.c.l.b16 %v493
        %v1358 = vunpack.c.l.b16 %v494
        %v1359 = vunpack.c.l.b16 %v495
        %v1360 = vunpack.c.l.b16 %v496
        %v1361 = vunpack.c.l.b16 %v497
        %v1362 = vunpack.c.l.b16 %v498
        %v1363 = vunpack.c.l.b16 %v499
        %v1364 = vunpack.c.l.b16 %v500
        %v1365 = vunpack.c.l.b16 %v501
        %v1366 = vunpack.c.l.b16 %v502
        %v1367 = vunpack.c.l.b16 %v503
        %v1368 = vunpack.c.l.b16 %v504
        %v1369 = vunpack.c.l.b16 %v505
        %v1370 = vunpack.c.l.b16 %v506
        %v1371 = vunpack.c.l.b16 %v507
        %v1372 = vunpack.c.l.b16 %v508
        %v1373 = vunpack.c.l.b16 %v509
        %v1374 = vunpack.c.l.b16 %v510
        %v1375 = vunpack.c.l.b16 %v511
        %v1376 = vunpack.c.l.b16 %v512
        %v1377 = vunpack.c.l.b16 %v513
        %v1378 = vunpack.c.l.b16 %v514
        %v1379 = vunpack.c.l.b16 %v515
        %v1380 = vunpack.c.l.b16 %v516
        %v1381 = vunpack.c.l.b16 %v517
        %v1382 = vunpack.c.l.b16 %v518
        %v1383 = vunpack.c.l.b16 %v519
        %v1384 = vunpack.c.l.b16 %v520
        %v1385 = vunpack.c.l.b16 %v521
        %v1386 = vunpack.c.l.b16 %v522
        %v1387 = vunpack.c.l.b16 %v523
        %v1388 = vunpack.c.l.b16 %v524
        %v1389 = vunpack.c.l.b16 %v525
        %v1390 = vunpack.c.l.b16 %v526
        %v1391 = vunpack.c.l.b16 %v527
        %v1392 = vunpack.c.l.b16 %v528
        %v1393 = vunpack.c.l.b16 %v529
        %v1394 = vunpack.c.l.b16 %v530
        %v1395 = vunpack.c.l.b16 %v531
        %v1396 = vunpack.c.l.b16 %v532
        %v1397 = vunpack.c.l.b16 %v533
        %v1398 = vunpack.c.l.b16 %v534
        %v1399 = vunpack.c.l.b16 %v535
        %v1400 = vunpack.c.l.b16 %v536
        %v1401 = vunpack.c.l.b16 %v537
        %v1402 = vunpack.c.l.b16 %v538
        %v1403 = vunpack.c.l.b16 %v539
        %v1404 = vunpack.c.l.b16 %v540
        %v1405 = vunpack.c.l.b16 %v541
        %v1406 = vunpack.c.l.b16 %v542
        %v1407 = vunpack.c.l.b16 %v543
        %v1408 = vunpack.c.l.b16 %v544
        %v1409 = vunpack.c.l.b16 %v545
        %v1410 = vunpack.c.l.b16 %v546
        %v1411 = vunpack.c.l.b16 %v547
        %v1412 = vunpack.c.l.b16 %v548
        %v1413 = vunpack.c.l.b16 %v549
        %v1414 = vunpack.c.l.b16 %v550
        %v1415 = vunpack.c.l.b16 %v551
        %v1416 = vunpack.c.l.b16 %v552
        %v1417 = vunpack.c.l.b16 %v553
        %v1418 = vunpack.c.l.b16 %v554
        %v1419 = vunpack.c.l.b16 %v555
        %v1420 = vunpack.c.l.b16 %v556
        %v1421 = vunpack.c.l.b16 %v557
        %v1422 = vunpack.c.l.b16 %v558
        %v1423 = vunpack.c.l.b16 %v559
        %v1424 = vunpack.c.l.b16 %v560
        %v1425 = vunpack.c.l.b16 %v561
        %v1426 = vunpack.c.l.b16 %v562
        %v1427 = vunpack.c.l.b16 %v563
        %v1428 = vunpack.c.l.b16 %v564
        %v1429 = vunpack.c.l.b16 %v565
        %v1430 = vunpack.c.l.b16 %v566
        %v1431 = vunpack.c.l.b16 %v567
        %v1432 = vunpack.c.l.b16 %v568
        %v1433 = vunpack.c.l.b16 %v569
        %v1434 = vunpack.c.l.b16 %v570
        %v1435 = vunpack.c.l.b16 %v571
        %v1436 = vunpack.c.l.b16 %v572
        %v1437 = vunpack.c.l.b16 %v573
        %v1438 = vpack.c.b16 %v1247, %v1246
        %v1439 = vpack.c.b16 %v1249, %v1248
        %v1440 = vpack.c.b16 %v1251, %v1250
        %v1441 = vpack.c.b16 %v1253, %v1252
        %v1442 = vpack.c.b16 %v1255, %v1254
        %v1443 = vpack.c.b16 %v1257, %v1256
        %v1444 = vpack.c.b16 %v1259, %v1258
        %v1445 = vpack.c.b16 %v1261, %v1260
        %v1446 = vpack.c.b16 %v1263, %v1262
        %v1447 = vpack.c.b16 %v1265, %v1264
        %v1448 = vpack.c.b16 %v1267, %v1266
        %v1449 = vpack.c.b16 %v1269, %v1268
        %v1450 = vpack.c.b16 %v1271, %v1270
        %v1451 = vpack.c.b16 %v1273, %v1272
        %v1452 = vpack.c.b16 %v1275, %v1274
        %v1453 = vpack.c.b16 %v1277, %v1276
        %v1454 = vpack.c.b16 %v1279, %v1278
        %v1455 = vpack.c.b16 %v1281, %v1280
        %v1456 = vpack.c.b16 %v1283, %v1282
        %v1457 = vpack.c.b16 %v1285, %v1284
        %v1458 = vpack.c.b16 %v1287, %v1286
        %v1459 = vpack.c.b16 %v1289, %v1288
        %v1460 = vpack.c.b16 %v1291, %v1290
        %v1461 = vpack.c.b16 %v1293, %v1292
        %v1462 = vpack.c.b16 %v1295, %v1294
        %v1463 = vpack.c.b16 %v1297, %v1296
        %v1464 = vpack.c.b16 %v1299, %v1298
        %v1465 = vpack.c.b16 %v1301, %v1300
        %v1466 = vpack.c.b16 %v1303, %v1302
        %v1467 = vpack.c.b16 %v1305, %v1304
        %v1468 = vpack.c.b16 %v1307, %v1306
        %v1469 = vpack.c.b16 %v1309, %v1308
        %v1470 = vpack.c.b16 %v1311, %v1310
        %v1471 = vpack.c.b16 %v1313, %v1312
        %v1472 = vpack.c.b16 %v1315, %v1314
        %v1473 = vpack.c.b16 %v1317, %v1316
        %v1474 = vpack.c.b16 %v1319, %v1318
        %v1475 = vpack.c.b16 %v1321, %v1320
        %v1476 = vpack.c.b16 %v1323, %v1322
        %v1477 = vpack.c.b16 %v1325, %v1324
        %v1478 = vpack.c.b16 %v1327, %v1326
        %v1479 = vpack.c.b16 %v1329, %v1328
        %v1480 = vpack.c.b16 %v1331, %v1330
        %v1481 = vpack.c.b16 %v1333, %v1332
        %v1482 = vpack.c.b16 %v1335, %v1334
        %v1483 = vpack.c.b16 %v1337, %v1336
        %v1484 = vpack.c.b16 %v1339, %v1338
        %v1485 = vpack.c.b16 %v1341, %v1340
        %v1486 = vpack.c.b16 %v1343, %v1342
        %v1487 = vpack.c.b16 %v1345, %v1344
        %v1488 = vpack.c.b16 %v1347, %v1346
        %v1489 = vpack.c.b16 %v1349, %v1348
        %v1490 = vpack.c.b16 %v1351, %v1350
        %v1491 = vpack.c.b16 %v1353, %v1352
        %v1492 = vpack.c.b16 %v1355, %v1354
        %v1493 = vpack.c.b16 %v1357, %v1356
        %v1494 = vpack.c.b16 %v1359, %v1358
        %v1495 = vpack.c.b16 %v1361, %v1360
        %v1496 = vpack.c.b16 %v1363, %v1362
        %v1497 = vpack.c.b16 %v1365, %v1364
        %v1498 = vpack.c.b16 %v1367, %v1366
        %v1499 = vpack.c.b16 %v1369, %v1368
        %v1500 = vpack.c.b16 %v1371, %v1370
        %v1501 = vpack.c.b16 %v1373, %v1372
        %v1502 = vpack.c.b16 %v1375, %v1374
        %v1503 = vpack.c.b16 %v1377, %v1376
        %v1504 = vpack.c.b16 %v1379, %v1378
        %v1505 = vpack.c.b16 %v1381, %v1380
        %v1506 = vpack.c.b16 %v1383, %v1382
        %v1507 = vpack.c.b16 %v1385, %v1384
        %v1508 = vpack.c.b16 %v1387, %v1386
        %v1509 = vpack.c.b16 %v1389, %v1388
        %v1510 = vpack.c.b16 %v1391, %v1390
        %v1511 = vpack.c.b16 %v1393, %v1392
        %v1512 = vpack.c.b16 %v1395, %v1394
        %v1513 = vpack.c.b16 %v1397, %v1396
        %v1514 = vpack.c.b16 %v1399, %v1398
        %v1515 = vpack.c.b16 %v1401, %v1400
        %v1516 = vpack.c.b16 %v1403, %v1402
        %v1517 = vpack.c.b16 %v1405, %v1404
        %v1518 = vpack.c.b16 %v1407, %v1406
        %v1519 = vpack.c.b16 %v1409, %v1408
        %v1520 = vpack.c.b16 %v1411, %v1410
        %v1521 = vpack.c.b16 %v1413, %v1412
        %v1522 = vpack.c.b16 %v1415, %v1414
        %v1523 = vpack.c.b16 %v1417, %v1416
        %v1524 = vpack.c.b16 %v1419, %v1418
        %v1525 = vpack.c.b16 %v1421, %v1420
        %v1526 = vpack.c.b16 %v1423, %v1422
        %v1527 = vpack.c.b16 %v1425, %v1424
        %v1528 = vpack.c.b16 %v1427, %v1426
        %v1529 = vpack.c.b16 %v1429, %v1428
        %v1530 = vpack.c.b16 %v1431, %v1430
        %v1531 = vpack.c.b16 %v1433, %v1432
        %v1532 = vpack.c.b16 %v1435, %v1434
        %v1533 = vpack.c.b16 %v1437, %v1436
        %1630 = vmatprep.subr.bf16.mxu0 0
        %1631 = vmatpush1.bf16.msra.mxu0 %v1445
        %1632 = vmatprep.subr.bf16.mxu0 0
        %1633 = vmatpush1.bf16.msra.mxu0 %v1444
        %1634 = vmatprep.subr.bf16.mxu0 0
        %1635 = vmatpush1.bf16.msra.mxu0 %v1443
        %1636 = vmatprep.subr.bf16.mxu0 0
        %1637 = vmatpush1.bf16.msra.mxu0 %v1442
        %1638 = vmatprep.subr.bf16.mxu0 0
        %1639 = vmatpush1.bf16.msra.mxu0 %v1441
        %1640 = vmatprep.subr.bf16.mxu0 0
        %1641 = vmatpush1.bf16.msra.mxu0 %v1440
        %1642 = vmatprep.subr.bf16.mxu0 0
        %1643 = vmatpush1.bf16.msra.mxu0 %v1439
        %1644 = vmatprep.subr.bf16.mxu0 0
        %1645 = vmatpush1.bf16.msra.mxu0 %v1438
        %1646 = vmatprep.subr.bf16.mxu0 0
        %1647 = vmatpush2.bf16.msra.mxu0 %v1453
        %1648 = vmatprep.subr.bf16.mxu0 0
        %1649 = vmatpush2.bf16.msra.mxu0 %v1452
        %1650 = vmatprep.subr.bf16.mxu0 0
        %1651 = vmatpush2.bf16.msra.mxu0 %v1451
        %1652 = vmatprep.subr.bf16.mxu0 0
        %1653 = vmatpush2.bf16.msra.mxu0 %v1450
        %1654 = vmatprep.subr.bf16.mxu0 0
        %1655 = vmatpush2.bf16.msra.mxu0 %v1449
        %1656 = vmatprep.subr.bf16.mxu0 0
        %1657 = vmatpush2.bf16.msra.mxu0 %v1448
        %1658 = vmatprep.subr.bf16.mxu0 0
        %1659 = vmatpush2.bf16.msra.mxu0 %v1447
        %1660 = vmatprep.subr.bf16.mxu0 0
        %1661 = vmatpush2.bf16.msra.mxu0 %v1446
        %1662 = vmatprep.mubr.bf16.mxu0 %v863
        %1663 = vmatmul.mubr.bf16.gmra.mxu0 %v862
        %v1664 = vpop.f32.mrf.mxu0
        %v1665 = vadd.f32 0.0, %v1664
        %v1666 = vpop.f32.mrf.mxu0
        %v1667 = vpop.f32.mrf.mxu0
        %v1668 = vadd.f32 0.0, %v1667
        %v1669 = vpop.f32.mrf.mxu0
        %1670 = vmatprep.mubr.bf16.mxu0 %v875
        %1671 = vmatmul.mubr.bf16.gmra.mxu0 %v874
        %v1672 = vpop.f32.mrf.mxu0
        %v1673 = vadd.f32 0.0, %v1672
        %v1674 = vpop.f32.mrf.mxu0
        %v1675 = vpop.f32.mrf.mxu0
        %v1676 = vadd.f32 0.0, %v1675
        %v1677 = vpop.f32.mrf.mxu0
        %1678 = vmatprep.mubr.bf16.mxu0 %v887
        %1679 = vmatmul.mubr.bf16.gmra.mxu0 %v886
        %v1680 = vpop.f32.mrf.mxu0
        %v1681 = vadd.f32 0.0, %v1680
        %v1682 = vpop.f32.mrf.mxu0
        %v1683 = vpop.f32.mrf.mxu0
        %v1684 = vadd.f32 0.0, %v1683
        %v1685 = vpop.f32.mrf.mxu0
        %1686 = vmatprep.mubr.bf16.mxu0 %v899
        %1687 = vmatmul.mubr.bf16.gmra.mxu0 %v898
        %v1688 = vpop.f32.mrf.mxu0
        %v1689 = vadd.f32 0.0, %v1688
        %v1690 = vpop.f32.mrf.mxu0
        %v1691 = vpop.f32.mrf.mxu0
        %v1692 = vadd.f32 0.0, %v1691
        %v1693 = vpop.f32.mrf.mxu0
        %1694 = vmatprep.mubr.bf16.mxu0 %v911
        %1695 = vmatmul.mubr.bf16.gmra.mxu0 %v910
        %v1696 = vpop.f32.mrf.mxu0
        %v1697 = vadd.f32 0.0, %v1696
        %v1698 = vpop.f32.mrf.mxu0
        %v1699 = vpop.f32.mrf.mxu0
        %v1700 = vadd.f32 0.0, %v1699
        %v1701 = vpop.f32.mrf.mxu0
        %1702 = vmatprep.mubr.bf16.mxu0 %v923
        %1703 = vmatmul.mubr.bf16.gmra.mxu0 %v922
        %v1704 = vpop.f32.mrf.mxu0
        %v1705 = vadd.f32 0.0, %v1704
        %v1706 = vpop.f32.mrf.mxu0
        %v1707 = vpop.f32.mrf.mxu0
        %v1708 = vadd.f32 0.0, %v1707
        %v1709 = vpop.f32.mrf.mxu0
        %1710 = vmatprep.mubr.bf16.mxu0 %v935
        %1711 = vmatmul.mubr.bf16.gmra.mxu0 %v934
        %v1712 = vpop.f32.mrf.mxu0
        %v1713 = vadd.f32 0.0, %v1712
        %v1714 = vpop.f32.mrf.mxu0
        %v1715 = vpop.f32.mrf.mxu0
        %v1716 = vadd.f32 0.0, %v1715
        %v1717 = vpop.f32.mrf.mxu0
        %1718 = vmatprep.mubr.bf16.mxu0 %v947
        %1719 = vmatmul.mubr.bf16.gmra.mxu0 %v946
        %v1720 = vpop.f32.mrf.mxu0
        %v1721 = vadd.f32 0.0, %v1720
        %v1722 = vpop.f32.mrf.mxu0
        %v1723 = vpop.f32.mrf.mxu0
        %v1724 = vadd.f32 0.0, %v1723
        %v1725 = vpop.f32.mrf.mxu0
        %1726 = vdwg.mxu0
        %1727 = vmatprep.subr.bf16.mxu0 0
        %1728 = vmatpush1.bf16.msra.mxu0 %v1461
        %1729 = vmatprep.subr.bf16.mxu0 0
        %1730 = vmatpush1.bf16.msra.mxu0 %v1460
        %1731 = vmatprep.subr.bf16.mxu0 0
        %1732 = vmatpush1.bf16.msra.mxu0 %v1459
        %1733 = vmatprep.subr.bf16.mxu0 0
        %1734 = vmatpush1.bf16.msra.mxu0 %v1458
        %1735 = vmatprep.subr.bf16.mxu0 0
        %1736 = vmatpush1.bf16.msra.mxu0 %v1457
        %1737 = vmatprep.subr.bf16.mxu0 0
        %1738 = vmatpush1.bf16.msra.mxu0 %v1456
        %1739 = vmatprep.subr.bf16.mxu0 0
        %1740 = vmatpush1.bf16.msra.mxu0 %v1455
        %1741 = vmatprep.subr.bf16.mxu0 0
        %1742 = vmatpush1.bf16.msra.mxu0 %v1454
        %1743 = vmatprep.subr.bf16.mxu0 0
        %1744 = vmatpush2.bf16.msra.mxu0 %v1469
        %1745 = vmatprep.subr.bf16.mxu0 0
        %1746 = vmatpush2.bf16.msra.mxu0 %v1468
        %1747 = vmatprep.subr.bf16.mxu0 0
        %1748 = vmatpush2.bf16.msra.mxu0 %v1467
        %1749 = vmatprep.subr.bf16.mxu0 0
        %1750 = vmatpush2.bf16.msra.mxu0 %v1466
        %1751 = vmatprep.subr.bf16.mxu0 0
        %1752 = vmatpush2.bf16.msra.mxu0 %v1465
        %1753 = vmatprep.subr.bf16.mxu0 0
        %1754 = vmatpush2.bf16.msra.mxu0 %v1464
        %1755 = vmatprep.subr.bf16.mxu0 0
        %1756 = vmatpush2.bf16.msra.mxu0 %v1463
        %1757 = vmatprep.subr.bf16.mxu0 0
        %1758 = vmatpush2.bf16.msra.mxu0 %v1462
        %1759 = vmatprep.mubr.bf16.mxu0 %v865
        %1760 = vmatmul.mubr.bf16.gmra.mxu0 %v864
        %v1761 = vpop.f32.mrf.mxu0
        %v1762 = vadd.f32 %v1665, %v1761
        %v1763 = vpop.f32.mrf.mxu0
        %v1764 = vpop.f32.mrf.mxu0
        %v1765 = vadd.f32 %v1668, %v1764
        %v1766 = vpop.f32.mrf.mxu0
        %1767 = vmatprep.mubr.bf16.mxu0 %v877
        %1768 = vmatmul.mubr.bf16.gmra.mxu0 %v876
        %v1769 = vpop.f32.mrf.mxu0
        %v1770 = vadd.f32 %v1673, %v1769
        %v1771 = vpop.f32.mrf.mxu0
        %v1772 = vpop.f32.mrf.mxu0
        %v1773 = vadd.f32 %v1676, %v1772
        %v1774 = vpop.f32.mrf.mxu0
        %1775 = vmatprep.mubr.bf16.mxu0 %v889
        %1776 = vmatmul.mubr.bf16.gmra.mxu0 %v888
        %v1777 = vpop.f32.mrf.mxu0
        %v1778 = vadd.f32 %v1681, %v1777
        %v1779 = vpop.f32.mrf.mxu0
        %v1780 = vpop.f32.mrf.mxu0
        %v1781 = vadd.f32 %v1684, %v1780
        %v1782 = vpop.f32.mrf.mxu0
        %1783 = vmatprep.mubr.bf16.mxu0 %v901
        %1784 = vmatmul.mubr.bf16.gmra.mxu0 %v900
        %v1785 = vpop.f32.mrf.mxu0
        %v1786 = vadd.f32 %v1689, %v1785
        %v1787 = vpop.f32.mrf.mxu0
        %v1788 = vpop.f32.mrf.mxu0
        %v1789 = vadd.f32 %v1692, %v1788
        %v1790 = vpop.f32.mrf.mxu0
        %1791 = vmatprep.mubr.bf16.mxu0 %v913
        %1792 = vmatmul.mubr.bf16.gmra.mxu0 %v912
        %v1793 = vpop.f32.mrf.mxu0
        %v1794 = vadd.f32 %v1697, %v1793
        %v1795 = vpop.f32.mrf.mxu0
        %v1796 = vpop.f32.mrf.mxu0
        %v1797 = vadd.f32 %v1700, %v1796
        %v1798 = vpop.f32.mrf.mxu0
        %1799 = vmatprep.mubr.bf16.mxu0 %v925
        %1800 = vmatmul.mubr.bf16.gmra.mxu0 %v924
        %v1801 = vpop.f32.mrf.mxu0
        %v1802 = vadd.f32 %v1705, %v1801
        %v1803 = vpop.f32.mrf.mxu0
        %v1804 = vpop.f32.mrf.mxu0
        %v1805 = vadd.f32 %v1708, %v1804
        %v1806 = vpop.f32.mrf.mxu0
        %1807 = vmatprep.mubr.bf16.mxu0 %v937
        %1808 = vmatmul.mubr.bf16.gmra.mxu0 %v936
        %v1809 = vpop.f32.mrf.mxu0
        %v1810 = vadd.f32 %v1713, %v1809
        %v1811 = vpop.f32.mrf.mxu0
        %v1812 = vpop.f32.mrf.mxu0
        %v1813 = vadd.f32 %v1716, %v1812
        %v1814 = vpop.f32.mrf.mxu0
        %1815 = vmatprep.mubr.bf16.mxu0 %v949
        %1816 = vmatmul.mubr.bf16.gmra.mxu0 %v948
        %v1817 = vpop.f32.mrf.mxu0
        %v1818 = vadd.f32 %v1721, %v1817
        %v1819 = vpop.f32.mrf.mxu0
        %v1820 = vpop.f32.mrf.mxu0
        %v1821 = vadd.f32 %v1724, %v1820
        %v1822 = vpop.f32.mrf.mxu0
        %1823 = vdwg.mxu0
        %1824 = vmatprep.subr.bf16.mxu0 0
        %1825 = vmatpush1.bf16.msra.mxu0 %v1477
        %1826 = vmatprep.subr.bf16.mxu0 0
        %1827 = vmatpush1.bf16.msra.mxu0 %v1476
        %1828 = vmatprep.subr.bf16.mxu0 0
        %1829 = vmatpush1.bf16.msra.mxu0 %v1475
        %1830 = vmatprep.subr.bf16.mxu0 0
        %1831 = vmatpush1.bf16.msra.mxu0 %v1474
        %1832 = vmatprep.subr.bf16.mxu0 0
        %1833 = vmatpush1.bf16.msra.mxu0 %v1473
        %1834 = vmatprep.subr.bf16.mxu0 0
        %1835 = vmatpush1.bf16.msra.mxu0 %v1472
        %1836 = vmatprep.subr.bf16.mxu0 0
        %1837 = vmatpush1.bf16.msra.mxu0 %v1471
        %1838 = vmatprep.subr.bf16.mxu0 0
        %1839 = vmatpush1.bf16.msra.mxu0 %v1470
        %1840 = vmatprep.subr.bf16.mxu0 0
        %1841 = vmatpush2.bf16.msra.mxu0 %v1485
        %1842 = vmatprep.subr.bf16.mxu0 0
        %1843 = vmatpush2.bf16.msra.mxu0 %v1484
        %1844 = vmatprep.subr.bf16.mxu0 0
        %1845 = vmatpush2.bf16.msra.mxu0 %v1483
        %1846 = vmatprep.subr.bf16.mxu0 0
        %1847 = vmatpush2.bf16.msra.mxu0 %v1482
        %1848 = vmatprep.subr.bf16.mxu0 0
        %1849 = vmatpush2.bf16.msra.mxu0 %v1481
        %1850 = vmatprep.subr.bf16.mxu0 0
        %1851 = vmatpush2.bf16.msra.mxu0 %v1480
        %1852 = vmatprep.subr.bf16.mxu0 0
        %1853 = vmatpush2.bf16.msra.mxu0 %v1479
        %1854 = vmatprep.subr.bf16.mxu0 0
        %1855 = vmatpush2.bf16.msra.mxu0 %v1478
        %1856 = vmatprep.mubr.bf16.mxu0 %v867
        %1857 = vmatmul.mubr.bf16.gmra.mxu0 %v866
        %v1858 = vpop.f32.mrf.mxu0
        %v1859 = vadd.f32 %v1762, %v1858
        %v1860 = vpop.f32.mrf.mxu0
        %v1861 = vpop.f32.mrf.mxu0
        %v1862 = vadd.f32 %v1765, %v1861
        %v1863 = vpop.f32.mrf.mxu0
        %1864 = vmatprep.mubr.bf16.mxu0 %v879
        %1865 = vmatmul.mubr.bf16.gmra.mxu0 %v878
        %v1866 = vpop.f32.mrf.mxu0
        %v1867 = vadd.f32 %v1770, %v1866
        %v1868 = vpop.f32.mrf.mxu0
        %v1869 = vpop.f32.mrf.mxu0
        %v1870 = vadd.f32 %v1773, %v1869
        %v1871 = vpop.f32.mrf.mxu0
        %1872 = vmatprep.mubr.bf16.mxu0 %v891
        %1873 = vmatmul.mubr.bf16.gmra.mxu0 %v890
        %v1874 = vpop.f32.mrf.mxu0
        %v1875 = vadd.f32 %v1778, %v1874
        %v1876 = vpop.f32.mrf.mxu0
        %v1877 = vpop.f32.mrf.mxu0
        %v1878 = vadd.f32 %v1781, %v1877
        %v1879 = vpop.f32.mrf.mxu0
        %1880 = vmatprep.mubr.bf16.mxu0 %v903
        %1881 = vmatmul.mubr.bf16.gmra.mxu0 %v902
        %v1882 = vpop.f32.mrf.mxu0
        %v1883 = vadd.f32 %v1786, %v1882
        %v1884 = vpop.f32.mrf.mxu0
        %v1885 = vpop.f32.mrf.mxu0
        %v1886 = vadd.f32 %v1789, %v1885
        %v1887 = vpop.f32.mrf.mxu0
        %1888 = vmatprep.mubr.bf16.mxu0 %v915
        %1889 = vmatmul.mubr.bf16.gmra.mxu0 %v914
        %v1890 = vpop.f32.mrf.mxu0
        %v1891 = vadd.f32 %v1794, %v1890
        %v1892 = vpop.f32.mrf.mxu0
        %v1893 = vpop.f32.mrf.mxu0
        %v1894 = vadd.f32 %v1797, %v1893
        %v1895 = vpop.f32.mrf.mxu0
        %1896 = vmatprep.mubr.bf16.mxu0 %v927
        %1897 = vmatmul.mubr.bf16.gmra.mxu0 %v926
        %v1898 = vpop.f32.mrf.mxu0
        %v1899 = vadd.f32 %v1802, %v1898
        %v1900 = vpop.f32.mrf.mxu0
        %v1901 = vpop.f32.mrf.mxu0
        %v1902 = vadd.f32 %v1805, %v1901
        %v1903 = vpop.f32.mrf.mxu0
        %1904 = vmatprep.mubr.bf16.mxu0 %v939
        %1905 = vmatmul.mubr.bf16.gmra.mxu0 %v938
        %v1906 = vpop.f32.mrf.mxu0
        %v1907 = vadd.f32 %v1810, %v1906
        %v1908 = vpop.f32.mrf.mxu0
        %v1909 = vpop.f32.mrf.mxu0
        %v1910 = vadd.f32 %v1813, %v1909
        %v1911 = vpop.f32.mrf.mxu0
        %1912 = vmatprep.mubr.bf16.mxu0 %v951
        %1913 = vmatmul.mubr.bf16.gmra.mxu0 %v950
        %v1914 = vpop.f32.mrf.mxu0
        %v1915 = vadd.f32 %v1818, %v1914
        %v1916 = vpop.f32.mrf.mxu0
        %v1917 = vpop.f32.mrf.mxu0
        %v1918 = vadd.f32 %v1821, %v1917
        %v1919 = vpop.f32.mrf.mxu0
        %1920 = vdwg.mxu0
        %1921 = vmatprep.subr.bf16.mxu0 0
        %1922 = vmatpush1.bf16.msra.mxu0 %v1493
        %1923 = vmatprep.subr.bf16.mxu0 0
        %1924 = vmatpush1.bf16.msra.mxu0 %v1492
        %1925 = vmatprep.subr.bf16.mxu0 0
        %1926 = vmatpush1.bf16.msra.mxu0 %v1491
        %1927 = vmatprep.subr.bf16.mxu0 0
        %1928 = vmatpush1.bf16.msra.mxu0 %v1490
        %1929 = vmatprep.subr.bf16.mxu0 0
        %1930 = vmatpush1.bf16.msra.mxu0 %v1489
        %1931 = vmatprep.subr.bf16.mxu0 0
        %1932 = vmatpush1.bf16.msra.mxu0 %v1488
        %1933 = vmatprep.subr.bf16.mxu0 0
        %1934 = vmatpush1.bf16.msra.mxu0 %v1487
        %1935 = vmatprep.subr.bf16.mxu0 0
        %1936 = vmatpush1.bf16.msra.mxu0 %v1486
        %1937 = vmatprep.subr.bf16.mxu0 0
        %1938 = vmatpush2.bf16.msra.mxu0 %v1501
        %1939 = vmatprep.subr.bf16.mxu0 0
        %1940 = vmatpush2.bf16.msra.mxu0 %v1500
        %1941 = vmatprep.subr.bf16.mxu0 0
        %1942 = vmatpush2.bf16.msra.mxu0 %v1499
        %1943 = vmatprep.subr.bf16.mxu0 0
        %1944 = vmatpush2.bf16.msra.mxu0 %v1498
        %1945 = vmatprep.subr.bf16.mxu0 0
        %1946 = vmatpush2.bf16.msra.mxu0 %v1497
        %1947 = vmatprep.subr.bf16.mxu0 0
        %1948 = vmatpush2.bf16.msra.mxu0 %v1496
        %1949 = vmatprep.subr.bf16.mxu0 0
        %1950 = vmatpush2.bf16.msra.mxu0 %v1495
        %1951 = vmatprep.subr.bf16.mxu0 0
        %1952 = vmatpush2.bf16.msra.mxu0 %v1494
        %1953 = vmatprep.mubr.bf16.mxu0 %v869
        %1954 = vmatmul.mubr.bf16.gmra.mxu0 %v868
        %v1955 = vpop.f32.mrf.mxu0
        %v1956 = vadd.f32 %v1859, %v1955
        %v1957 = vpop.f32.mrf.mxu0
        %v1958 = vpop.f32.mrf.mxu0
        %v1959 = vadd.f32 %v1862, %v1958
        %v1960 = vpop.f32.mrf.mxu0
        %1961 = vmatprep.mubr.bf16.mxu0 %v881
        %1962 = vmatmul.mubr.bf16.gmra.mxu0 %v880
        %v1963 = vpop.f32.mrf.mxu0
        %v1964 = vadd.f32 %v1867, %v1963
        %v1965 = vpop.f32.mrf.mxu0
        %v1966 = vpop.f32.mrf.mxu0
        %v1967 = vadd.f32 %v1870, %v1966
        %v1968 = vpop.f32.mrf.mxu0
        %1969 = vmatprep.mubr.bf16.mxu0 %v893
        %1970 = vmatmul.mubr.bf16.gmra.mxu0 %v892
        %v1971 = vpop.f32.mrf.mxu0
        %v1972 = vadd.f32 %v1875, %v1971
        %v1973 = vpop.f32.mrf.mxu0
        %v1974 = vpop.f32.mrf.mxu0
        %v1975 = vadd.f32 %v1878, %v1974
        %v1976 = vpop.f32.mrf.mxu0
        %1977 = vmatprep.mubr.bf16.mxu0 %v905
        %1978 = vmatmul.mubr.bf16.gmra.mxu0 %v904
        %v1979 = vpop.f32.mrf.mxu0
        %v1980 = vadd.f32 %v1883, %v1979
        %v1981 = vpop.f32.mrf.mxu0
        %v1982 = vpop.f32.mrf.mxu0
        %v1983 = vadd.f32 %v1886, %v1982
        %v1984 = vpop.f32.mrf.mxu0
        %1985 = vmatprep.mubr.bf16.mxu0 %v917
        %1986 = vmatmul.mubr.bf16.gmra.mxu0 %v916
        %v1987 = vpop.f32.mrf.mxu0
        %v1988 = vadd.f32 %v1891, %v1987
        %v1989 = vpop.f32.mrf.mxu0
        %v1990 = vpop.f32.mrf.mxu0
        %v1991 = vadd.f32 %v1894, %v1990
        %v1992 = vpop.f32.mrf.mxu0
        %1993 = vmatprep.mubr.bf16.mxu0 %v929
        %1994 = vmatmul.mubr.bf16.gmra.mxu0 %v928
        %v1995 = vpop.f32.mrf.mxu0
        %v1996 = vadd.f32 %v1899, %v1995
        %v1997 = vpop.f32.mrf.mxu0
        %v1998 = vpop.f32.mrf.mxu0
        %v1999 = vadd.f32 %v1902, %v1998
        %v2000 = vpop.f32.mrf.mxu0
        %2001 = vmatprep.mubr.bf16.mxu0 %v941
        %2002 = vmatmul.mubr.bf16.gmra.mxu0 %v940
        %v2003 = vpop.f32.mrf.mxu0
        %v2004 = vadd.f32 %v1907, %v2003
        %v2005 = vpop.f32.mrf.mxu0
        %v2006 = vpop.f32.mrf.mxu0
        %v2007 = vadd.f32 %v1910, %v2006
        %v2008 = vpop.f32.mrf.mxu0
        %2009 = vmatprep.mubr.bf16.mxu0 %v953
        %2010 = vmatmul.mubr.bf16.gmra.mxu0 %v952
        %v2011 = vpop.f32.mrf.mxu0
        %v2012 = vadd.f32 %v1915, %v2011
        %v2013 = vpop.f32.mrf.mxu0
        %v2014 = vpop.f32.mrf.mxu0
        %v2015 = vadd.f32 %v1918, %v2014
        %v2016 = vpop.f32.mrf.mxu0
        %2017 = vdwg.mxu0
        %2018 = vmatprep.subr.bf16.mxu0 0
        %2019 = vmatpush1.bf16.msra.mxu0 %v1509
        %2020 = vmatprep.subr.bf16.mxu0 0
        %2021 = vmatpush1.bf16.msra.mxu0 %v1508
        %2022 = vmatprep.subr.bf16.mxu0 0
        %2023 = vmatpush1.bf16.msra.mxu0 %v1507
        %2024 = vmatprep.subr.bf16.mxu0 0
        %2025 = vmatpush1.bf16.msra.mxu0 %v1506
        %2026 = vmatprep.subr.bf16.mxu0 0
        %2027 = vmatpush1.bf16.msra.mxu0 %v1505
        %2028 = vmatprep.subr.bf16.mxu0 0
        %2029 = vmatpush1.bf16.msra.mxu0 %v1504
        %2030 = vmatprep.subr.bf16.mxu0 0
        %2031 = vmatpush1.bf16.msra.mxu0 %v1503
        %2032 = vmatprep.subr.bf16.mxu0 0
        %2033 = vmatpush1.bf16.msra.mxu0 %v1502
        %2034 = vmatprep.subr.bf16.mxu0 0
        %2035 = vmatpush2.bf16.msra.mxu0 %v1517
        %2036 = vmatprep.subr.bf16.mxu0 0
        %2037 = vmatpush2.bf16.msra.mxu0 %v1516
        %2038 = vmatprep.subr.bf16.mxu0 0
        %2039 = vmatpush2.bf16.msra.mxu0 %v1515
        %2040 = vmatprep.subr.bf16.mxu0 0
        %2041 = vmatpush2.bf16.msra.mxu0 %v1514
        %2042 = vmatprep.subr.bf16.mxu0 0
        %2043 = vmatpush2.bf16.msra.mxu0 %v1513
        %2044 = vmatprep.subr.bf16.mxu0 0
        %2045 = vmatpush2.bf16.msra.mxu0 %v1512
        %2046 = vmatprep.subr.bf16.mxu0 0
        %2047 = vmatpush2.bf16.msra.mxu0 %v1511
        %2048 = vmatprep.subr.bf16.mxu0 0
        %2049 = vmatpush2.bf16.msra.mxu0 %v1510
        %2050 = vmatprep.mubr.bf16.mxu0 %v871
        %2051 = vmatmul.mubr.bf16.gmra.mxu0 %v870
        %v2052 = vpop.f32.mrf.mxu0
        %v2053 = vadd.f32 %v1956, %v2052
        %v2054 = vpop.f32.mrf.mxu0
        %v2055 = vpop.f32.mrf.mxu0
        %v2056 = vadd.f32 %v1959, %v2055
        %v2057 = vpop.f32.mrf.mxu0
        %2058 = vmatprep.mubr.bf16.mxu0 %v883
        %2059 = vmatmul.mubr.bf16.gmra.mxu0 %v882
        %v2060 = vpop.f32.mrf.mxu0
        %v2061 = vadd.f32 %v1964, %v2060
        %v2062 = vpop.f32.mrf.mxu0
        %v2063 = vpop.f32.mrf.mxu0
        %v2064 = vadd.f32 %v1967, %v2063
        %v2065 = vpop.f32.mrf.mxu0
        %2066 = vmatprep.mubr.bf16.mxu0 %v895
        %2067 = vmatmul.mubr.bf16.gmra.mxu0 %v894
        %v2068 = vpop.f32.mrf.mxu0
        %v2069 = vadd.f32 %v1972, %v2068
        %v2070 = vpop.f32.mrf.mxu0
        %v2071 = vpop.f32.mrf.mxu0
        %v2072 = vadd.f32 %v1975, %v2071
        %v2073 = vpop.f32.mrf.mxu0
        %2074 = vmatprep.mubr.bf16.mxu0 %v907
        %2075 = vmatmul.mubr.bf16.gmra.mxu0 %v906
        %v2076 = vpop.f32.mrf.mxu0
        %v2077 = vadd.f32 %v1980, %v2076
        %v2078 = vpop.f32.mrf.mxu0
        %v2079 = vpop.f32.mrf.mxu0
        %v2080 = vadd.f32 %v1983, %v2079
        %v2081 = vpop.f32.mrf.mxu0
        %2082 = vmatprep.mubr.bf16.mxu0 %v919
        %2083 = vmatmul.mubr.bf16.gmra.mxu0 %v918
        %v2084 = vpop.f32.mrf.mxu0
        %v2085 = vadd.f32 %v1988, %v2084
        %v2086 = vpop.f32.mrf.mxu0
        %v2087 = vpop.f32.mrf.mxu0
        %v2088 = vadd.f32 %v1991, %v2087
        %v2089 = vpop.f32.mrf.mxu0
        %2090 = vmatprep.mubr.bf16.mxu0 %v931
        %2091 = vmatmul.mubr.bf16.gmra.mxu0 %v930
        %v2092 = vpop.f32.mrf.mxu0
        %v2093 = vadd.f32 %v1996, %v2092
        %v2094 = vpop.f32.mrf.mxu0
        %v2095 = vpop.f32.mrf.mxu0
        %v2096 = vadd.f32 %v1999, %v2095
        %v2097 = vpop.f32.mrf.mxu0
        %2098 = vmatprep.mubr.bf16.mxu0 %v943
        %2099 = vmatmul.mubr.bf16.gmra.mxu0 %v942
        %v2100 = vpop.f32.mrf.mxu0
        %v2101 = vadd.f32 %v2004, %v2100
        %v2102 = vpop.f32.mrf.mxu0
        %v2103 = vpop.f32.mrf.mxu0
        %v2104 = vadd.f32 %v2007, %v2103
        %v2105 = vpop.f32.mrf.mxu0
        %2106 = vmatprep.mubr.bf16.mxu0 %v955
        %2107 = vmatmul.mubr.bf16.gmra.mxu0 %v954
        %v2108 = vpop.f32.mrf.mxu0
        %v2109 = vadd.f32 %v2012, %v2108
        %v2110 = vpop.f32.mrf.mxu0
        %v2111 = vpop.f32.mrf.mxu0
        %v2112 = vadd.f32 %v2015, %v2111
        %v2113 = vpop.f32.mrf.mxu0
        %2114 = vdwg.mxu0
        %2115 = vmatprep.subr.bf16.mxu0 0
        %2116 = vmatpush1.bf16.msra.mxu0 %v1525
        %2117 = vmatprep.subr.bf16.mxu0 0
        %2118 = vmatpush1.bf16.msra.mxu0 %v1524
        %2119 = vmatprep.subr.bf16.mxu0 0
        %2120 = vmatpush1.bf16.msra.mxu0 %v1523
        %2121 = vmatprep.subr.bf16.mxu0 0
        %2122 = vmatpush1.bf16.msra.mxu0 %v1522
        %2123 = vmatprep.subr.bf16.mxu0 0
        %2124 = vmatpush1.bf16.msra.mxu0 %v1521
        %2125 = vmatprep.subr.bf16.mxu0 0
        %2126 = vmatpush1.bf16.msra.mxu0 %v1520
        %2127 = vmatprep.subr.bf16.mxu0 0
        %2128 = vmatpush1.bf16.msra.mxu0 %v1519
        %2129 = vmatprep.subr.bf16.mxu0 0
        %2130 = vmatpush1.bf16.msra.mxu0 %v1518
        %2131 = vmatprep.subr.bf16.mxu0 0
        %2132 = vmatpush2.bf16.msra.mxu0 %v1533
        %2133 = vmatprep.subr.bf16.mxu0 0
        %2134 = vmatpush2.bf16.msra.mxu0 %v1532
        %2135 = vmatprep.subr.bf16.mxu0 0
        %2136 = vmatpush2.bf16.msra.mxu0 %v1531
        %2137 = vmatprep.subr.bf16.mxu0 0
        %2138 = vmatpush2.bf16.msra.mxu0 %v1530
        %2139 = vmatprep.subr.bf16.mxu0 0
        %2140 = vmatpush2.bf16.msra.mxu0 %v1529
        %2141 = vmatprep.subr.bf16.mxu0 0
        %2142 = vmatpush2.bf16.msra.mxu0 %v1528
        %2143 = vmatprep.subr.bf16.mxu0 0
        %2144 = vmatpush2.bf16.msra.mxu0 %v1527
        %2145 = vmatprep.subr.bf16.mxu0 0
        %2146 = vmatpush2.bf16.msra.mxu0 %v1526
        %2147 = vmatprep.mubr.bf16.mxu0 %v873
        %2148 = vmatmul.mubr.bf16.gmra.mxu0 %v872
        %v2149 = vpop.f32.mrf.mxu0
        %v2150 = vadd.f32 %v2053, %v2149
        %v2151 = vpop.f32.mrf.mxu0
        %v2152 = vpop.f32.mrf.mxu0
        %v2153 = vadd.f32 %v2056, %v2152
        %v2154 = vpop.f32.mrf.mxu0
        %2155 = vmatprep.mubr.bf16.mxu0 %v885
        %2156 = vmatmul.mubr.bf16.gmra.mxu0 %v884
        %v2157 = vpop.f32.mrf.mxu0
        %v2158 = vadd.f32 %v2061, %v2157
        %v2159 = vpop.f32.mrf.mxu0
        %v2160 = vpop.f32.mrf.mxu0
        %v2161 = vadd.f32 %v2064, %v2160
        %v2162 = vpop.f32.mrf.mxu0
        %2163 = vmatprep.mubr.bf16.mxu0 %v897
        %2164 = vmatmul.mubr.bf16.gmra.mxu0 %v896
        %v2165 = vpop.f32.mrf.mxu0
        %v2166 = vadd.f32 %v2069, %v2165
        %v2167 = vpop.f32.mrf.mxu0
        %v2168 = vpop.f32.mrf.mxu0
        %v2169 = vadd.f32 %v2072, %v2168
        %v2170 = vpop.f32.mrf.mxu0
        %2171 = vmatprep.mubr.bf16.mxu0 %v909
        %2172 = vmatmul.mubr.bf16.gmra.mxu0 %v908
        %v2173 = vpop.f32.mrf.mxu0
        %v2174 = vadd.f32 %v2077, %v2173
        %v2175 = vpop.f32.mrf.mxu0
        %v2176 = vpop.f32.mrf.mxu0
        %v2177 = vadd.f32 %v2080, %v2176
        %v2178 = vpop.f32.mrf.mxu0
        %2179 = vmatprep.mubr.bf16.mxu0 %v921
        %2180 = vmatmul.mubr.bf16.gmra.mxu0 %v920
        %v2181 = vpop.f32.mrf.mxu0
        %v2182 = vadd.f32 %v2085, %v2181
        %v2183 = vpop.f32.mrf.mxu0
        %v2184 = vpop.f32.mrf.mxu0
        %v2185 = vadd.f32 %v2088, %v2184
        %v2186 = vpop.f32.mrf.mxu0
        %2187 = vmatprep.mubr.bf16.mxu0 %v933
        %2188 = vmatmul.mubr.bf16.gmra.mxu0 %v932
        %v2189 = vpop.f32.mrf.mxu0
        %v2190 = vadd.f32 %v2093, %v2189
        %v2191 = vpop.f32.mrf.mxu0
        %v2192 = vpop.f32.mrf.mxu0
        %v2193 = vadd.f32 %v2096, %v2192
        %v2194 = vpop.f32.mrf.mxu0
        %2195 = vmatprep.mubr.bf16.mxu0 %v945
        %2196 = vmatmul.mubr.bf16.gmra.mxu0 %v944
        %v2197 = vpop.f32.mrf.mxu0
        %v2198 = vadd.f32 %v2101, %v2197
        %v2199 = vpop.f32.mrf.mxu0
        %v2200 = vpop.f32.mrf.mxu0
        %v2201 = vadd.f32 %v2104, %v2200
        %v2202 = vpop.f32.mrf.mxu0
        %2203 = vmatprep.mubr.bf16.mxu0 %v957
        %2204 = vmatmul.mubr.bf16.gmra.mxu0 %v956
        %v2205 = vpop.f32.mrf.mxu0
        %v2206 = vadd.f32 %v2109, %v2205
        %v2207 = vpop.f32.mrf.mxu0
        %v2208 = vpop.f32.mrf.mxu0
        %v2209 = vadd.f32 %v2112, %v2208
        %v2210 = vpop.f32.mrf.mxu0
        %2211 = vdwg.mxu0
        %v2212 = vpack.c.bf16 %v2153, %v2150
        %v2213 = vpack.c.bf16 %v2161, %v2158
        %v2214 = vpack.c.bf16 %v2169, %v2166
        %v2215 = vpack.c.bf16 %v2177, %v2174
        %v2216 = vpack.c.bf16 %v2185, %v2182
        %v2217 = vpack.c.bf16 %v2193, %v2190
        %v2218 = vpack.c.bf16 %v2201, %v2198
        %v2219 = vpack.c.bf16 %v2209, %v2206
        %v2220 = vlaneseq
        %v2221 = vshrl.u32 %v2220, 7
        %v2222 = vsub.s32 0, %v2221
        %v2223 = vrot.slane %v269, %v2222
        %v2240 = vunpack.c.l.b16 %v270
        %v2241 = vunpack.c.l.b16 %v271
        %v2242 = vunpack.c.l.b16 %v272
        %v2243 = vunpack.c.l.b16 %v273
        %v2244 = vunpack.c.l.b16 %v274
        %v2245 = vunpack.c.l.b16 %v275
        %v2246 = vunpack.c.l.b16 %v276
        %v2247 = vunpack.c.l.b16 %v277
        %v2248 = vunpack.c.l.b16 %v278
        %v2249 = vunpack.c.l.b16 %v279
        %v2250 = vunpack.c.l.b16 %v280
        %v2251 = vunpack.c.l.b16 %v281
        %v2252 = vunpack.c.l.b16 %v282
        %v2253 = vunpack.c.l.b16 %v283
        %v2254 = vunpack.c.l.b16 %v284
        %v2255 = vunpack.c.l.b16 %v285
        %v2256 = vpack.c.b16 %v2241, %v2240
        %v2257 = vpack.c.b16 %v2243, %v2242
        %v2258 = vpack.c.b16 %v2245, %v2244
        %v2259 = vpack.c.b16 %v2247, %v2246
        %v2260 = vpack.c.b16 %v2249, %v2248
        %v2261 = vpack.c.b16 %v2251, %v2250
        %v2262 = vpack.c.b16 %v2253, %v2252
        %v2263 = vpack.c.b16 %v2255, %v2254
        %2272 = vmatprep.subr.bf16.mxu0 0
        %2273 = vmatpush1.bf16.msra.mxu0 %v2219
        %2274 = vmatprep.subr.bf16.mxu0 0
        %2275 = vmatpush1.bf16.msra.mxu0 %v2218
        %2276 = vmatprep.subr.bf16.mxu0 0
        %2277 = vmatpush1.bf16.msra.mxu0 %v2217
        %2278 = vmatprep.subr.bf16.mxu0 0
        %2279 = vmatpush1.bf16.msra.mxu0 %v2216
        %2280 = vmatprep.subr.bf16.mxu0 0
        %2281 = vmatpush1.bf16.msra.mxu0 %v2215
        %2282 = vmatprep.subr.bf16.mxu0 0
        %2283 = vmatpush1.bf16.msra.mxu0 %v2214
        %2284 = vmatprep.subr.bf16.mxu0 0
        %2285 = vmatpush1.bf16.msra.mxu0 %v2213
        %2286 = vmatprep.subr.bf16.mxu0 0
        %2287 = vmatpush1.bf16.msra.mxu0 %v2212
        %2288 = vmatprep.subr.bf16.mxu0 0
        %2289 = vmatpush2.bf16.msra.mxu0 0
        %2290 = vmatprep.subr.bf16.mxu0 0
        %2291 = vmatpush2.bf16.msra.mxu0 0
        %2292 = vmatprep.subr.bf16.mxu0 0
        %2293 = vmatpush2.bf16.msra.mxu0 0
        %2294 = vmatprep.subr.bf16.mxu0 0
        %2295 = vmatpush2.bf16.msra.mxu0 0
        %2296 = vmatprep.subr.bf16.mxu0 0
        %2297 = vmatpush2.bf16.msra.mxu0 0
        %2298 = vmatprep.subr.bf16.mxu0 0
        %2299 = vmatpush2.bf16.msra.mxu0 0
        %2300 = vmatprep.subr.bf16.mxu0 0
        %2301 = vmatpush2.bf16.msra.mxu0 0
        %2302 = vmatprep.subr.bf16.mxu0 0
        %2303 = vmatpush2.bf16.msra.mxu0 0
        %2304 = vmatprep.mubr.bf16.mxu0 0
        %2305 = vmatmul.mubr.bf16.gmra.mxu0 %v2256
        %v2306 = vpop.f32.mrf.mxu0
        %v2307 = vadd.f32 %v2223, %v2306
        %v2308 = vpop.f32.mrf.mxu0
        %v2309 = vpop.f32.mrf.mxu0
        %v2310 = vadd.f32 %v2223, %v2309
        %v2311 = vpop.f32.mrf.mxu0
        %2312 = vmatprep.mubr.bf16.mxu0 0
        %2313 = vmatmul.mubr.bf16.gmra.mxu0 %v2257
        %v2314 = vpop.f32.mrf.mxu0
        %v2315 = vadd.f32 %v2223, %v2314
        %v2316 = vpop.f32.mrf.mxu0
        %v2317 = vpop.f32.mrf.mxu0
        %v2318 = vadd.f32 %v2223, %v2317
        %v2319 = vpop.f32.mrf.mxu0
        %2320 = vmatprep.mubr.bf16.mxu0 0
        %2321 = vmatmul.mubr.bf16.gmra.mxu0 %v2258
        %v2322 = vpop.f32.mrf.mxu0
        %v2323 = vadd.f32 %v2223, %v2322
        %v2324 = vpop.f32.mrf.mxu0
        %v2325 = vpop.f32.mrf.mxu0
        %v2326 = vadd.f32 %v2223, %v2325
        %v2327 = vpop.f32.mrf.mxu0
        %2328 = vmatprep.mubr.bf16.mxu0 0
        %2329 = vmatmul.mubr.bf16.gmra.mxu0 %v2259
        %v2330 = vpop.f32.mrf.mxu0
        %v2331 = vadd.f32 %v2223, %v2330
        %v2332 = vpop.f32.mrf.mxu0
        %v2333 = vpop.f32.mrf.mxu0
        %v2334 = vadd.f32 %v2223, %v2333
        %v2335 = vpop.f32.mrf.mxu0
        %2336 = vmatprep.mubr.bf16.mxu0 0
        %2337 = vmatmul.mubr.bf16.gmra.mxu0 %v2260
        %v2338 = vpop.f32.mrf.mxu0
        %v2339 = vadd.f32 %v2223, %v2338
        %v2340 = vpop.f32.mrf.mxu0
        %v2341 = vpop.f32.mrf.mxu0
        %v2342 = vadd.f32 %v2223, %v2341
        %v2343 = vpop.f32.mrf.mxu0
        %2344 = vmatprep.mubr.bf16.mxu0 0
        %2345 = vmatmul.mubr.bf16.gmra.mxu0 %v2261
        %v2346 = vpop.f32.mrf.mxu0
        %v2347 = vadd.f32 %v2223, %v2346
        %v2348 = vpop.f32.mrf.mxu0
        %v2349 = vpop.f32.mrf.mxu0
        %v2350 = vadd.f32 %v2223, %v2349
        %v2351 = vpop.f32.mrf.mxu0
        %2352 = vmatprep.mubr.bf16.mxu0 0
        %2353 = vmatmul.mubr.bf16.gmra.mxu0 %v2262
        %v2354 = vpop.f32.mrf.mxu0
        %v2355 = vadd.f32 %v2223, %v2354
        %v2356 = vpop.f32.mrf.mxu0
        %v2357 = vpop.f32.mrf.mxu0
        %v2358 = vadd.f32 %v2223, %v2357
        %v2359 = vpop.f32.mrf.mxu0
        %2360 = vmatprep.mubr.bf16.mxu0 0
        %2361 = vmatmul.mubr.bf16.gmra.mxu0 %v2263
        %v2362 = vpop.f32.mrf.mxu0
        %v2363 = vadd.f32 %v2223, %v2362
        %v2364 = vpop.f32.mrf.mxu0
        %v2365 = vpop.f32.mrf.mxu0
        %v2366 = vadd.f32 %v2223, %v2365
        %v2367 = vpop.f32.mrf.mxu0
        %2368 = vdwg.mxu0
        %v2369 = vmax.f32 %v2307, 0.0
        %v2370 = vmax.f32 %v2310, 0.0
        %v2371 = vmax.f32 %v2315, 0.0
        %v2372 = vmax.f32 %v2318, 0.0
        %v2373 = vmax.f32 %v2323, 0.0
        %v2374 = vmax.f32 %v2326, 0.0
        %v2375 = vmax.f32 %v2331, 0.0
        %v2376 = vmax.f32 %v2334, 0.0
        %v2377 = vmax.f32 %v2339, 0.0
        %v2378 = vmax.f32 %v2342, 0.0
        %v2379 = vmax.f32 %v2347, 0.0
        %v2380 = vmax.f32 %v2350, 0.0
        %v2381 = vmax.f32 %v2355, 0.0
        %v2382 = vmax.f32 %v2358, 0.0
        %v2383 = vmax.f32 %v2363, 0.0
        %v2384 = vmax.f32 %v2366, 0.0
        %v2385 = vpack.c.bf16 %v2370, %v2369
        %v2386 = vpack.c.bf16 %v2372, %v2371
        %v2387 = vpack.c.bf16 %v2374, %v2373
        %v2388 = vpack.c.bf16 %v2376, %v2375
        %v2389 = vpack.c.bf16 %v2378, %v2377
        %v2390 = vpack.c.bf16 %v2380, %v2379
        %v2391 = vpack.c.bf16 %v2382, %v2381
        %v2392 = vpack.c.bf16 %v2384, %v2383
        %2393 = vmatprep.subr.bf16.mxu0 0
        %2394 = vmatpush1.bf16.msra.mxu0 %v2392
        %2395 = vmatprep.subr.bf16.mxu0 0
        %2396 = vmatpush1.bf16.msra.mxu0 %v2391
        %2397 = vmatprep.subr.bf16.mxu0 0
        %2398 = vmatpush1.bf16.msra.mxu0 %v2390
        %2399 = vmatprep.subr.bf16.mxu0 0
        %2400 = vmatpush1.bf16.msra.mxu0 %v2389
        %2401 = vmatprep.subr.bf16.mxu0 0
        %2402 = vmatpush1.bf16.msra.mxu0 %v2388
        %2403 = vmatprep.subr.bf16.mxu0 0
        %2404 = vmatpush1.bf16.msra.mxu0 %v2387
        %2405 = vmatprep.subr.bf16.mxu0 0
        %2406 = vmatpush1.bf16.msra.mxu0 %v2386
        %2407 = vmatprep.subr.bf16.mxu0 0
        %2408 = vmatpush1.bf16.msra.mxu0 %v2385
        %2409 = vmatprep.subr.bf16.mxu0 0
        %2410 = vmatpush2.bf16.msra.mxu0 0
        %2411 = vmatprep.subr.bf16.mxu0 0
        %2412 = vmatpush2.bf16.msra.mxu0 0
        %2413 = vmatprep.subr.bf16.mxu0 0
        %2414 = vmatpush2.bf16.msra.mxu0 0
        %2415 = vmatprep.subr.bf16.mxu0 0
        %2416 = vmatpush2.bf16.msra.mxu0 0
        %2417 = vmatprep.subr.bf16.mxu0 0
        %2418 = vmatpush2.bf16.msra.mxu0 0
        %2419 = vmatprep.subr.bf16.mxu0 0
        %2420 = vmatpush2.bf16.msra.mxu0 0
        %2421 = vmatprep.subr.bf16.mxu0 0
        %2422 = vmatpush2.bf16.msra.mxu0 0
        %2423 = vmatprep.subr.bf16.mxu0 0
        %2424 = vmatpush2.bf16.msra.mxu0 0
        %2425 = vmatprep.mubr.bf16.mxu0 0
        %2426 = vmatmul.mubr.bf16.gmra.mxu0 %v2256
        %v2427 = vpop.f32.mrf.mxu0
        %v2428 = vadd.f32 0.0, %v2427
        %v2429 = vpop.f32.mrf.mxu0
        %v2430 = vpop.f32.mrf.mxu0
        %v2431 = vadd.f32 0.0, %v2430
        %v2432 = vpop.f32.mrf.mxu0
        %2433 = vmatprep.mubr.bf16.mxu0 0
        %2434 = vmatmul.mubr.bf16.gmra.mxu0 %v2257
        %v2435 = vpop.f32.mrf.mxu0
        %v2436 = vadd.f32 0.0, %v2435
        %v2437 = vpop.f32.mrf.mxu0
        %v2438 = vpop.f32.mrf.mxu0
        %v2439 = vadd.f32 0.0, %v2438
        %v2440 = vpop.f32.mrf.mxu0
        %2441 = vmatprep.mubr.bf16.mxu0 0
        %2442 = vmatmul.mubr.bf16.gmra.mxu0 %v2258
        %v2443 = vpop.f32.mrf.mxu0
        %v2444 = vadd.f32 0.0, %v2443
        %v2445 = vpop.f32.mrf.mxu0
        %v2446 = vpop.f32.mrf.mxu0
        %v2447 = vadd.f32 0.0, %v2446
        %v2448 = vpop.f32.mrf.mxu0
        %2449 = vmatprep.mubr.bf16.mxu0 0
        %2450 = vmatmul.mubr.bf16.gmra.mxu0 %v2259
        %v2451 = vpop.f32.mrf.mxu0
        %v2452 = vadd.f32 0.0, %v2451
        %v2453 = vpop.f32.mrf.mxu0
        %v2454 = vpop.f32.mrf.mxu0
        %v2455 = vadd.f32 0.0, %v2454
        %v2456 = vpop.f32.mrf.mxu0
        %2457 = vmatprep.mubr.bf16.mxu0 0
        %2458 = vmatmul.mubr.bf16.gmra.mxu0 %v2260
        %v2459 = vpop.f32.mrf.mxu0
        %v2460 = vadd.f32 0.0, %v2459
        %v2461 = vpop.f32.mrf.mxu0
        %v2462 = vpop.f32.mrf.mxu0
        %v2463 = vadd.f32 0.0, %v2462
        %v2464 = vpop.f32.mrf.mxu0
        %2465 = vmatprep.mubr.bf16.mxu0 0
        %2466 = vmatmul.mubr.bf16.gmra.mxu0 %v2261
        %v2467 = vpop.f32.mrf.mxu0
        %v2468 = vadd.f32 0.0, %v2467
        %v2469 = vpop.f32.mrf.mxu0
        %v2470 = vpop.f32.mrf.mxu0
        %v2471 = vadd.f32 0.0, %v2470
        %v2472 = vpop.f32.mrf.mxu0
        %2473 = vmatprep.mubr.bf16.mxu0 0
        %2474 = vmatmul.mubr.bf16.gmra.mxu0 %v2262
        %v2475 = vpop.f32.mrf.mxu0
        %v2476 = vadd.f32 0.0, %v2475
        %v2477 = vpop.f32.mrf.mxu0
        %v2478 = vpop.f32.mrf.mxu0
        %v2479 = vadd.f32 0.0, %v2478
        %v2480 = vpop.f32.mrf.mxu0
        %2481 = vmatprep.mubr.bf16.mxu0 0
        %2482 = vmatmul.mubr.bf16.gmra.mxu0 %v2263
        %v2483 = vpop.f32.mrf.mxu0
        %v2484 = vadd.f32 0.0, %v2483
        %v2485 = vpop.f32.mrf.mxu0
        %v2486 = vpop.f32.mrf.mxu0
        %v2487 = vadd.f32 0.0, %v2486
        %v2488 = vpop.f32.mrf.mxu0
        %2489 = vdwg.mxu0
        %v2490 = vpack.c.bf16 %v2431, %v2428
        %v2491 = vpack.c.bf16 %v2439, %v2436
        %v2492 = vpack.c.bf16 %v2447, %v2444
        %v2493 = vpack.c.bf16 %v2455, %v2452
        %v2494 = vpack.c.bf16 %v2463, %v2460
        %v2495 = vpack.c.bf16 %v2471, %v2468
        %v2496 = vpack.c.bf16 %v2479, %v2476
        %v2497 = vpack.c.bf16 %v2487, %v2484
        %v2498 = vld [vmem:[%s3] sm:$0xf]
        %v2499 = vld [vmem:[%s3 + $0x4] sm:$0xf]
        %v2500 = vlaneseq
        %v2501 = vshrl.u32 %v2500, 7
        %v2502 = vsub.s32 1, %v2501
        %v2503 = vrot.slane %v269, %v2502
        %v2506 = vunpack.c.l.b16 %v2498
        %v2507 = vunpack.c.l.b16 %v2499
        %v2508 = vpack.c.b16 %v2507, %v2506
        %vm2510 = vcmask 130048
        %v2512 = vsel %vm2510, %v2490, 0
        %v2515 = vsel %vm2510, %v2491, 0
        %v2518 = vsel %vm2510, %v2492, 0
        %v2521 = vsel %vm2510, %v2493, 0
        %v2524 = vsel %vm2510, %v2494, 0
        %v2527 = vsel %vm2510, %v2495, 0
        %v2530 = vsel %vm2510, %v2496, 0
        %v2533 = vsel %vm2510, %v2497, 0
        %2535 = vmatprep.subr.bf16.mxu0 0
        %2536 = vmatpush1.bf16.msra.mxu0 0
        %2537 = vmatprep.subr.bf16.mxu0 0
        %2538 = vmatpush1.bf16.msra.mxu0 0
        %2539 = vmatprep.subr.bf16.mxu0 0
        %2540 = vmatpush1.bf16.msra.mxu0 0
        %2541 = vmatprep.subr.bf16.mxu0 0
        %2542 = vmatpush1.bf16.msra.mxu0 0
        %2543 = vmatprep.subr.bf16.mxu0 0
        %2544 = vmatpush1.bf16.msra.mxu0 0
        %2545 = vmatprep.subr.bf16.mxu0 0
        %2546 = vmatpush1.bf16.msra.mxu0 0
        %2547 = vmatprep.subr.bf16.mxu0 0
        %2548 = vmatpush1.bf16.msra.mxu0 0
        %2549 = vmatprep.subr.bf16.mxu0 0
        %2550 = vmatpush1.bf16.msra.mxu0 %v2508
        %2551 = vmatprep.subr.bf16.mxu0 0
        %2552 = vmatpush2.bf16.msra.mxu0 0
        %2553 = vmatprep.subr.bf16.mxu0 0
        %2554 = vmatpush2.bf16.msra.mxu0 0
        %2555 = vmatprep.subr.bf16.mxu0 0
        %2556 = vmatpush2.bf16.msra.mxu0 0
        %2557 = vmatprep.subr.bf16.mxu0 0
        %2558 = vmatpush2.bf16.msra.mxu0 0
        %2559 = vmatprep.subr.bf16.mxu0 0
        %2560 = vmatpush2.bf16.msra.mxu0 0
        %2561 = vmatprep.subr.bf16.mxu0 0
        %2562 = vmatpush2.bf16.msra.mxu0 0
        %2563 = vmatprep.subr.bf16.mxu0 0
        %2564 = vmatpush2.bf16.msra.mxu0 0
        %2565 = vmatprep.subr.bf16.mxu0 0
        %2566 = vmatpush2.bf16.msra.mxu0 0
        %2567 = vmatprep.mubr.bf16.mxu0 0
        %2568 = vmatmul.mubr.bf16.gmra.mxu0 %v2512
        %v2569 = vpop.f32.mrf.mxu0
        %v2570 = vadd.f32 %v2503, %v2569
        %v2571 = vpop.f32.mrf.mxu0
        %v2572 = vpop.f32.mrf.mxu0
        %v2573 = vadd.f32 %v2503, %v2572
        %v2574 = vpop.f32.mrf.mxu0
        %2575 = vmatprep.mubr.bf16.mxu0 0
        %2576 = vmatmul.mubr.bf16.gmra.mxu0 %v2515
        %v2577 = vpop.f32.mrf.mxu0
        %v2578 = vadd.f32 %v2503, %v2577
        %v2579 = vpop.f32.mrf.mxu0
        %v2580 = vpop.f32.mrf.mxu0
        %v2581 = vadd.f32 %v2503, %v2580
        %v2582 = vpop.f32.mrf.mxu0
        %2583 = vmatprep.mubr.bf16.mxu0 0
        %2584 = vmatmul.mubr.bf16.gmra.mxu0 %v2518
        %v2585 = vpop.f32.mrf.mxu0
        %v2586 = vadd.f32 %v2503, %v2585
        %v2587 = vpop.f32.mrf.mxu0
        %v2588 = vpop.f32.mrf.mxu0
        %v2589 = vadd.f32 %v2503, %v2588
        %v2590 = vpop.f32.mrf.mxu0
        %2591 = vmatprep.mubr.bf16.mxu0 0
        %2592 = vmatmul.mubr.bf16.gmra.mxu0 %v2521
        %v2593 = vpop.f32.mrf.mxu0
        %v2594 = vadd.f32 %v2503, %v2593
        %v2595 = vpop.f32.mrf.mxu0
        %v2596 = vpop.f32.mrf.mxu0
        %v2597 = vadd.f32 %v2503, %v2596
        %v2598 = vpop.f32.mrf.mxu0
        %2599 = vmatprep.mubr.bf16.mxu0 0
        %2600 = vmatmul.mubr.bf16.gmra.mxu0 %v2524
        %v2601 = vpop.f32.mrf.mxu0
        %v2602 = vadd.f32 %v2503, %v2601
        %v2603 = vpop.f32.mrf.mxu0
        %v2604 = vpop.f32.mrf.mxu0
        %v2605 = vadd.f32 %v2503, %v2604
        %v2606 = vpop.f32.mrf.mxu0
        %2607 = vmatprep.mubr.bf16.mxu0 0
        %2608 = vmatmul.mubr.bf16.gmra.mxu0 %v2527
        %v2609 = vpop.f32.mrf.mxu0
        %v2610 = vadd.f32 %v2503, %v2609
        %v2611 = vpop.f32.mrf.mxu0
        %v2612 = vpop.f32.mrf.mxu0
        %v2613 = vadd.f32 %v2503, %v2612
        %v2614 = vpop.f32.mrf.mxu0
        %2615 = vmatprep.mubr.bf16.mxu0 0
        %2616 = vmatmul.mubr.bf16.gmra.mxu0 %v2530
        %v2617 = vpop.f32.mrf.mxu0
        %v2618 = vadd.f32 %v2503, %v2617
        %v2619 = vpop.f32.mrf.mxu0
        %v2620 = vpop.f32.mrf.mxu0
        %v2621 = vadd.f32 %v2503, %v2620
        %v2622 = vpop.f32.mrf.mxu0
        %2623 = vmatprep.mubr.bf16.mxu0 0
        %2624 = vmatmul.mubr.bf16.gmra.mxu0 %v2533
        %v2625 = vpop.f32.mrf.mxu0
        %v2626 = vadd.f32 %v2503, %v2625
        %v2627 = vpop.f32.mrf.mxu0
        %v2628 = vpop.f32.mrf.mxu0
        %v2629 = vadd.f32 %v2503, %v2628
        %v2630 = vpop.f32.mrf.mxu0
        %2631 = vdwg.mxu0
        %v2632 = vpack.c.bf16 %v2573, %v2570
        %v2633 = vpack.c.bf16 %v2581, %v2578
        %v2634 = vpack.c.bf16 %v2589, %v2586
        %v2635 = vpack.c.bf16 %v2597, %v2594
        %v2636 = vpack.c.bf16 %v2605, %v2602
        %v2637 = vpack.c.bf16 %v2613, %v2610
        %v2638 = vpack.c.bf16 %v2621, %v2618
        %v2639 = vpack.c.bf16 %v2629, %v2626
        %v2648 = vunpack.c.l.b16 %v2632
        %v2649 = vunpack.c.h.b16 %v2632
        %v2650 = vunpack.c.l.b16 %v2633
        %v2651 = vunpack.c.h.b16 %v2633
        %v2652 = vunpack.c.l.b16 %v2634
        %v2653 = vunpack.c.h.b16 %v2634
        %v2654 = vunpack.c.l.b16 %v2635
        %v2655 = vunpack.c.h.b16 %v2635
        %v2656 = vunpack.c.l.b16 %v2636
        %v2657 = vunpack.c.h.b16 %v2636
        %v2658 = vunpack.c.l.b16 %v2637
        %v2659 = vunpack.c.h.b16 %v2637
        %v2660 = vunpack.c.l.b16 %v2638
        %v2661 = vunpack.c.h.b16 %v2638
        %v2662 = vunpack.c.l.b16 %v2639
        %v2663 = vunpack.c.h.b16 %v2639
        %v2664 = vpack.c.b16 %v2648, %v2648
        %v2665 = vpack.c.b16 %v2649, %v2649
        %v2666 = vpack.c.b16 %v2650, %v2650
        %v2667 = vpack.c.b16 %v2651, %v2651
        %v2668 = vpack.c.b16 %v2652, %v2652
        %v2669 = vpack.c.b16 %v2653, %v2653
        %v2670 = vpack.c.b16 %v2654, %v2654
        %v2671 = vpack.c.b16 %v2655, %v2655
        %v2672 = vpack.c.b16 %v2656, %v2656
        %v2673 = vpack.c.b16 %v2657, %v2657
        %v2674 = vpack.c.b16 %v2658, %v2658
        %v2675 = vpack.c.b16 %v2659, %v2659
        %v2676 = vpack.c.b16 %v2660, %v2660
        %v2677 = vpack.c.b16 %v2661, %v2661
        %v2678 = vpack.c.b16 %v2662, %v2662
        %v2679 = vpack.c.b16 %v2663, %v2663
        %2696 = vst [vmem:[%s259] sm:$0xf] %v2664
        %2697 = vst [vmem:[%s259 + $0x4] sm:$0xf] %v2665
        %2698 = vst [vmem:[%s259 + $0x8] sm:$0xf] %v2666
        %2699 = vst [vmem:[%s259 + $0xc] sm:$0xf] %v2667
        %2700 = vst [vmem:[%s259 + $0x10] sm:$0xf] %v2668
        %2701 = vst [vmem:[%s259 + $0x14] sm:$0xf] %v2669
        %2702 = vst [vmem:[%s259 + $0x18] sm:$0xf] %v2670
        %2703 = vst [vmem:[%s259 + $0x1c] sm:$0xf] %v2671
        %2704 = vst [vmem:[%s259 + $0x20] sm:$0xf] %v2672
        %2705 = vst [vmem:[%s259 + $0x24] sm:$0xf] %v2673
        %2706 = vst [vmem:[%s259 + $0x28] sm:$0xf] %v2674
        %2707 = vst [vmem:[%s259 + $0x2c] sm:$0xf] %v2675
        %2708 = vst [vmem:[%s259 + $0x30] sm:$0xf] %v2676
        %2709 = vst [vmem:[%s259 + $0x34] sm:$0xf] %v2677
        %2710 = vst [vmem:[%s259 + $0x38] sm:$0xf] %v2678
        %2711 = vst [vmem:[%s259 + $0x3c] sm:$0xf] %v2679
        %s2712 = sand.u32 %s145, 1
        %s2713 = scalar_lea.sflag [#allocation4], %s2712
        %s2714 = sand.u32 %s145, 1
        %s2715 = smul.addr %s2714, 64
        %s2716 = scalar_lea.vmem [#allocation5], %s2715
        // Predicated region
        $region45: #{tpu_custom_call.1} parent=39 // pred_check
          %p2717 = pneg %p155
        $region46: #{tpu_custom_call.1} parent=39 // pred_check_branch
          %2719 = sbr.rel (%p2717) target = $region48
        $region47: #{tpu_custom_call.1} parent=39 // pred_region
          %s2720 = smul.u32 16, %s22
          %s2722 = ssub.s32 1024, 1024
          %2723 = vsyncadd %s2713, %s2722
          %s2724 = smul.addr %s2720, 64
          %s2725 = scalar_lea.hbm %s5, %s2724
          %s2726 = sshll.u32 %s2716, 4
          %s2727 = int_to_ptr.vmem [resolvable:$true] %s2726
          %2732 = dma.vmem_to_hbm [thread:$0]  %s2727, 1024, %s2725, %s2713, 64, 64, 4
        $region48: #{tpu_custom_call.1} parent=39 // pred_fallthru
          _
      $region40: #{tpu_custom_call.1} parent=5 // pred_fallthru
        _
      %p2733 = scmp.le.s32.totalorder 2, %s17
      // Predicated region
      $region49: #{tpu_custom_call.1} parent=5 // pred_check
        %p2734 = pneg %p2733
      $region50: #{tpu_custom_call.1} parent=5 // pred_check_branch
        %2736 = sbr.rel (%p2734) target = $region52
      $region51: #{tpu_custom_call.1} parent=5 // pred_region
        %s2737 = ssub.s32 %s17, 2
        // Predicated region
        $region53: #{tpu_custom_call.1} parent=51 // pred_check
          %p2738 = pneg %p161
        $region54: #{tpu_custom_call.1} parent=51 // pred_check_branch
          %2740 = sbr.rel (%p2738) target = $region56
        $region55: #{tpu_custom_call.1} parent=51 // pred_region
          %s2741 = sand.u32 %s146, 1
          %s2742 = scalar_lea.sflag [#allocation4], %s2741
          %s2743 = sand.u32 %s146, 1
          %s2744 = smul.addr %s2743, 64
          %s2745 = scalar_lea.vmem [#allocation5], %s2744
          %2746 = dma.done %s2742, 1024
        $region56: #{tpu_custom_call.1} parent=51 // pred_fallthru
          _
      $region52: #{tpu_custom_call.1} parent=5 // pred_fallthru
        _
    $region6: #{tpu_custom_call.1} parent=1 // loop_footer
      %s21 = sadd.s32 1, %s17
    $region7: #{tpu_custom_call.1} parent=1 // loop_footer_branch
      %16 = sbr.rel target = $region3
    $region8: #{tpu_custom_call.1} parent=1 // loop_exit
      _
    %2747 = vsyncpa [#allocation3], 1
    %s2748 = scalar_lea.sflag [#allocation3], 1
    %2749 = vsyncpa %s2748, 1
    %2750 = vsyncpa [#allocation4], 1
    %s2751 = scalar_lea.sflag [#allocation4], 1
    %2752 = vsyncpa %s2751, 1

</llo_original>
